<compile_context>
chip_gen: v6e
topology: v6e:2x2x1
jax: 0.10.0
libtpu: 0.0.40
codegen_flags: <defaults>
</compile_context>

<pallas_src>
import functools

import jax
import jax.numpy as jnp
from jax.experimental import pallas as pl
from jax.experimental.pallas import tpu as pltpu


def _round_up(x: int, m: int) -> int:
    return ((x + m - 1) // m) * m


def _chip_info():
    """Best-effort TPU generation detection (perf heuristics only)."""
    kind = ""
    try:
        kind = jax.devices()[0].device_kind.lower()
    except Exception:
        pass
    if "v6" in kind:                        # v6e: 1 TC, 256-deep MXU, 128 MiB VMEM
        return {"num_tc": 1, "mxu_depth": 256, "vmem_limit": 96 << 20}
    if "v5 lite" in kind or "v5e" in kind:  # v5e: 1 TC, 128-deep MXU, 128 MiB VMEM
        return {"num_tc": 1, "mxu_depth": 128, "vmem_limit": 96 << 20}
    if "7" in kind:                         # v7x: 2 TCs, 256-deep MXU, 64 MiB VMEM/TC
        return {"num_tc": 2, "mxu_depth": 256, "vmem_limit": 48 << 20}
    # Unknown / older chip: conservative defaults.
    return {"num_tc": 1, "mxu_depth": 128, "vmem_limit": 32 << 20}


def _propogator_kernel(a_ref, se_ref, sc_ref, *rest, fuse_rz, use_mxu_bmm):
    if fuse_rz:
        w_in_ref, wts_ref, b_ref, out_ref = rest
    else:
        wa_ref, ws_ref, wts_ref, b_ref, out_ref = rest

    bt, n, dp = sc_ref.shape
    rows = bt * n
    bf16 = jnp.bfloat16

    a = a_ref[...]                       # (bt, n, n)  f32
    se = se_ref[...]                     # (bt, n, dp) f32

    if use_mxu_bmm:
        # Large N: batched MXU contraction (exact f32, multi-pass on the MXU).
        # TODO(synk): for very large N add a K-tiled grid axis + VMEM accumulator
        # so the (bt, N, N) A block stays under v7x's 64 MiB VMEM.
        a_cur = jnp.einsum("bij,bjd->bid", a, se,
                           preferred_element_type=jnp.float32)
    else:
        # Small N: N-term broadcast-FMA on the VPU.  K=N would badly underfill
        # the MXU (push/drain-latency dominated), and this keeps a_cur exact f32.
        a_cur = a[:, :, 0:1] * se[:, 0:1, :]
        for j in range(1, n):
            a_cur = a_cur + a[:, :, j:j + 1] * se[:, j:j + 1, :]

    # Gates are row-wise -> flatten (bt, n, dp) -> (bt*n, dp).  The wrapper pads
    # the node count to a multiple of 8, so this reshape is layout-free for f32.
    a_flat = a_cur.reshape(rows, dp)
    sc = sc_ref[...].reshape(rows, dp)

    if fuse_rz:
        # K = 2*dp exactly fills the 256-deep MXU (v6e/v7x):
        #   [a_cur | sc] @ [[Wr_a|Wz_a|Wt_a],[Wr_s|Wz_s|0]] + [br|bz|bt]
        x_in = jnp.concatenate([a_flat, sc], axis=1).astype(bf16)       # (rows, 2dp)
        g = jnp.dot(x_in, w_in_ref[...],
                    preferred_element_type=jnp.float32) + b_ref[...]    # (rows, 3dp)
        pre_r, pre_z, h_a = g[:, :dp], g[:, dp:2 * dp], g[:, 2 * dp:]
    else:
        # Split form: v5e's 128-deep MXU (K=dp already fills it), or dp >= 256
        # where the fused zero block would cost real MACs.
        ga = jnp.dot(a_flat.astype(bf16), wa_ref[...],
                     preferred_element_type=jnp.float32) + b_ref[...]   # (rows, 3dp)
        gs = jnp.dot(sc.astype(bf16), ws_ref[...],
                     preferred_element_type=jnp.float32)                # (rows, 2dp)
        pre_r = ga[:, :dp] + gs[:, :dp]
        pre_z = ga[:, dp:2 * dp] + gs[:, dp:2 * dp]
        h_a = ga[:, 2 * dp:]

    # sigmoid(x) = 0.5*(1 + tanh(x/2)): one EUP push per element instead of
    # exp + reciprocal -> roughly halves EUP pressure for the r/z gates.
    r = 0.5 * (1.0 + jnp.tanh(0.5 * pre_r))
    z = 0.5 * (1.0 + jnp.tanh(0.5 * pre_z))

    h_hat = jnp.tanh(h_a + jnp.dot((r * sc).astype(bf16), wts_ref[...],
                                   preferred_element_type=jnp.float32))

    # out = (1-z)*sc + z*h_hat  ==  sc + z*(h_hat - sc)
    out = sc + z * (h_hat - sc)
    out_ref[...] = out.reshape(bt, n, dp).astype(out_ref.dtype)


def pack_params(params, state_dim, *, chip=None):
    """One-time weight packing.  Call once per GGNN run and reuse across the
    propagation steps (hoists pad/transpose/concat/bf16-cast off the hot path)."""
    chip = chip or _chip_info()
    d = state_dim
    dp = _round_up(d, 128)
    pad = dp - d
    fuse_rz = (dp == 128) and (chip["mxu_depth"] >= 256)
    f32, bf16 = jnp.float32, jnp.bfloat16

    def split_pad(w):
        # (D, 2D) -> two transposed, zero-padded (Dp, Dp) halves so the kernel
        # right-multiplies (removes torch.cat from the hot path).
        w = jnp.asarray(w, f32)
        w_a = jnp.pad(w[:, :d].T, ((0, pad), (0, pad)))   # acts on a_cur
        w_s = jnp.pad(w[:, d:].T, ((0, pad), (0, pad)))   # acts on state_cur
        return w_a, w_s

    wr_a, wr_s = split_pad(params["w_reset"])
    wz_a, wz_s = split_pad(params["w_update"])
    wt_a, wt_s = split_pad(params["w_transform"])

    pad_bias = lambda b: jnp.pad(jnp.asarray(b, f32), (0, pad))
    bias = jnp.concatenate([pad_bias(params["b_reset"]),
                            pad_bias(params["b_update"]),
                            pad_bias(params["b_transform"])]).reshape(1, 3 * dp)

    w_a3 = jnp.concatenate([wr_a, wz_a, wt_a], axis=1)            # (dp, 3dp)
    packed = {"dp": dp, "fuse_rz": fuse_rz, "chip": chip,
              "bias": bias, "w_t_s": wt_s.astype(bf16)}
    if fuse_rz:
        w_s3 = jnp.concatenate([wr_s, wz_s, jnp.zeros_like(wt_s)], axis=1)
        packed["w_in"] = jnp.concatenate([w_a3, w_s3], axis=0).astype(bf16)  # (2dp,3dp)
    else:
        packed["w_a3"] = w_a3.astype(bf16)                                   # (dp, 3dp)
        packed["w_s2"] = jnp.concatenate([wr_s, wz_s], axis=1).astype(bf16)  # (dp, 2dp)
    return packed


def _choose_block_b(batch, n_pad, dp, num_tc):
    """Batch tile: cap in-kernel f32 intermediates (~40 B per row-feature live)
    at a few MiB, favour big single-TC tiles, and keep >= 2 grid steps per
    TensorCore on multi-TC chips when the batch allows it."""
    max_rows = max(n_pad, (4 << 20) // (40 * dp))
    target_rows = 512 if num_tc == 1 else 256
    rows = min(max_rows, target_rows)
    bt = max(1, min(batch, rows // n_pad))
    if num_tc > 1 and batch >= 2 * num_tc:
        bt = min(bt, -(-batch // (2 * num_tc)))
    return bt


def propogator_padded(state_edge_p, state_cur_p, A_p, packed, *, block_b=None):
    """Core call on already-padded arrays: states (B, Np, Dp) f32 with Np % 8 == 0
    and Dp % 128 == 0 (zero-padded), A (B, Np, Np) f32.  Returns (B, Np, Dp) f32
    with the padded feature columns still exactly zero, so a multi-step GGNN can
    keep everything in this layout."""
    B, n_pad, dp = state_cur_p.shape
    chip = packed["chip"]
    fuse_rz = packed["fuse_rz"]
    assert dp == packed["dp"] and n_pad % 8 == 0

    bt = block_b if block_b is not None else _choose_block_b(B, n_pad, dp, chip["num_tc"])
    bt = max(1, min(int(bt), B))
    steps = -(-B // bt)
    if chip["num_tc"] > 1 and steps > 1 and steps % chip["num_tc"]:
        steps += chip["num_tc"] - steps % chip["num_tc"]     # even split across TCs
    b_total = steps * bt
    if b_total != B:                                         # pad batch, never drop it
        extra = b_total - B
        A_p = jnp.pad(A_p, ((0, extra), (0, 0), (0, 0)))
        state_edge_p = jnp.pad(state_edge_p, ((0, extra), (0, 0), (0, 0)))
        state_cur_p = jnp.pad(state_cur_p, ((0, extra), (0, 0), (0, 0)))

    use_mxu_bmm = n_pad > 32
    kernel = functools.partial(_propogator_kernel,
                               fuse_rz=fuse_rz, use_mxu_bmm=use_mxu_bmm)

    if fuse_rz:
        weights = [packed["w_in"], packed["w_t_s"], packed["bias"]]
        w_shapes = [(2 * dp, 3 * dp), (dp, dp), (1, 3 * dp)]
    else:
        weights = [packed["w_a3"], packed["w_s2"], packed["w_t_s"], packed["bias"]]
        w_shapes = [(dp, 3 * dp), (dp, 2 * dp), (dp, dp), (1, 3 * dp)]

    batch_blk = lambda shape: pl.BlockSpec(shape, lambda b: (b, 0, 0))

    def run(single_buffer_weights):
        def const_blk(shape):
            if single_buffer_weights:
                # Constant index map -> one resident copy, no wasted double buffer.
                return pl.BlockSpec(shape, lambda b: (0, 0),
                                    pipeline_mode=pl.Buffered(1))
            return pl.BlockSpec(shape, lambda b: (0, 0))

        return pl.pallas_call(
            kernel,
            out_shape=jax.ShapeDtypeStruct((b_total, n_pad, dp), jnp.float32),
            grid_spec=pltpu.PrefetchScalarGridSpec(
                num_scalar_prefetch=0,
                grid=(steps,),
                in_specs=[batch_blk((bt, n_pad, n_pad)),   # A           (f32)
                          batch_blk((bt, n_pad, dp)),      # state_edge  (f32, padded)
                          batch_blk((bt, n_pad, dp))]      # state_cur   (f32, padded)
                         + [const_blk(s) for s in w_shapes],
                out_specs=batch_blk((bt, n_pad, dp)),
            ),
            compiler_params=pltpu.CompilerParams(
                dimension_semantics=("parallel",),
                vmem_limit_bytes=chip["vmem_limit"],
            ),
        )(A_p, state_edge_p, state_cur_p, *weights)

    try:
        out_p = run(True)
    except Exception:
        # Fallback for jax versions without single-buffer pipeline_mode support.
        out_p = run(False)

    return out_p[:B]


def propogator(state_edge, state_cur, A, params=None, *, packed=None, block_b=None):
    """Full-precision convenience wrapper: pads node/feature dims, runs the
    kernel, slices back.  For multi-step GGNN, pass a precomputed `packed`
    (pack_params) and prefer propogator_padded to avoid per-step pad/slice."""
    if packed is None:
        if params is None:
            raise ValueError("provide either `params` or `packed`")
        packed = pack_params(params, state_cur.shape[-1])

    B, N, D = state_cur.shape
    dp = packed["dp"]
    n_pad = _round_up(N, 8)
    fpad, npad = dp - D, n_pad - N

    pad_state = lambda x: jnp.pad(jnp.asarray(x, jnp.float32),
                                  ((0, 0), (0, npad), (0, fpad)))
    se_p = pad_state(state_edge)
    sc_p = pad_state(state_cur)
    A_p = jnp.pad(jnp.asarray(A, jnp.float32), ((0, 0), (0, npad), (0, npad)))

    out_p = propogator_padded(se_p, sc_p, A_p, packed, block_b=block_b)
    return out_p[:, :N, :D]


def propogator_ref(state_edge, state_cur, A, params):
    """Pure-JAX f32 reference mirroring the PyTorch forward exactly."""
    a_cur = jnp.einsum("bij,bjd->bid", A, state_edge)
    a = jnp.concatenate([a_cur, state_cur], axis=2)
    r = jax.nn.sigmoid(a @ params["w_reset"].T + params["b_reset"])
    z = jax.nn.sigmoid(a @ params["w_update"].T + params["b_update"])
    joined = jnp.concatenate([a_cur, r * state_cur], axis=2)
    h_hat = jnp.tanh(joined @ params["w_transform"].T + params["b_transform"])
    return (1.0 - z) * state_cur + z * h_hat


def init_params(key, state_dim):
    # nn.Linear default init: U(-1/sqrt(fan_in), 1/sqrt(fan_in)) with fan_in = 2*D.
    bound = (2 * state_dim) ** -0.5
    keys = jax.random.split(key, 6)
    mk_w = lambda k: jax.random.uniform(k, (state_dim, 2 * state_dim),
                                        jnp.float32, -bound, bound)
    mk_b = lambda k: jax.random.uniform(k, (state_dim,), jnp.float32, -bound, bound)
    return {
        "w_reset": mk_w(keys[0]), "b_reset": mk_b(keys[1]),
        "w_update": mk_w(keys[2]), "b_update": mk_b(keys[3]),
        "w_transform": mk_w(keys[4]), "b_transform": mk_b(keys[5]),
    }


if __name__ == "__main__":
    B, N, D = 2, 8, 32   # batch, nodes, state_dim
    key = jax.random.PRNGKey(0)
    k_se, k_sc, k_A, k_p = jax.random.split(key, 4)

    state_edge = jax.random.normal(k_se, (B, N, D), jnp.float32)
    state_cur = jax.random.normal(k_sc, (B, N, D), jnp.float32)
    A = jax.random.uniform(k_A, (B, N, N), jnp.float32)
    params = init_params(k_p, D)

    packed = pack_params(params, D)     # one-time weight prep (hoisted out of hot loop)
    out = propogator(state_edge, state_cur, A, params, packed=packed)
    jax.block_until_ready(out)

    ref = propogator_ref(state_edge, state_cur, A, params)
    assert out.shape == (B, N, D)
    # bf16 MXU gate-matmul operands (f32 accumulate) -> relaxed tolerance vs. f32 ref.
    assert jnp.allclose(out, ref, atol=5e-2, rtol=5e-2), \
        float(jnp.max(jnp.abs(out - ref)))
    print("KERNEL_OK")
</pallas_src>

<mosaic_0001>
module attributes {stable_mosaic.version = 11 : i64} {
  func.func @_propogator_kernel(%arg0: i32, %arg1: memref<2x8x8xf32, #tpu.memory_space<vmem>>, %arg2: memref<2x8x128xf32, #tpu.memory_space<vmem>>, %arg3: memref<2x8x128xf32, #tpu.memory_space<vmem>>, %arg4: memref<128x384xbf16, #tpu.memory_space<vmem>>, %arg5: memref<128x256xbf16, #tpu.memory_space<vmem>>, %arg6: memref<128x128xbf16, #tpu.memory_space<vmem>>, %arg7: memref<1x384xf32, #tpu.memory_space<vmem>>, %arg8: memref<2x8x128xf32, #tpu.memory_space<vmem>>) attributes {dimension_semantics = [#tpu.dimension_semantics<parallel>], iteration_bounds = array<i64: 1>, scalar_prefetch = 0 : i64, scratch_operands = 0 : i64, tpu.core_type = #tpu.core_type<tc>, window_params = [{transform_indices = @transform_0, window_bounds = array<i64: 2, 8, 8>}, {transform_indices = @transform_1, window_bounds = array<i64: 2, 8, 128>}, {transform_indices = @transform_2, window_bounds = array<i64: 2, 8, 128>}, {pipeline_mode = #tpu.pipeline_mode<synchronous>, transform_indices = @transform_3, window_bounds = array<i64: 128, 384>}, {pipeline_mode = #tpu.pipeline_mode<synchronous>, transform_indices = @transform_4, window_bounds = array<i64: 128, 256>}, {pipeline_mode = #tpu.pipeline_mode<synchronous>, transform_indices = @transform_5, window_bounds = array<i64: 128, 128>}, {pipeline_mode = #tpu.pipeline_mode<synchronous>, transform_indices = @transform_6, window_bounds = array<i64: 1, 384>}, {transform_indices = @transform_7, window_bounds = array<i64: 2, 8, 128>}]} {
    %c0 = arith.constant 0 : index
    %c0_0 = arith.constant 0 : index
    %c0_1 = arith.constant 0 : index
    %0 = vector.load %arg1[%c0, %c0_0, %c0_1] : memref<2x8x8xf32, #tpu.memory_space<vmem>>, vector<2x8x8xf32>
    %c0_2 = arith.constant 0 : index
    %c0_3 = arith.constant 0 : index
    %c0_4 = arith.constant 0 : index
    %1 = vector.load %arg2[%c0_2, %c0_3, %c0_4] : memref<2x8x128xf32, #tpu.memory_space<vmem>>, vector<2x8x128xf32>
    %2 = vector.extract_strided_slice %0 {offsets = [0, 0, 0], sizes = [2, 8, 1], strides = [1, 1, 1]} : vector<2x8x8xf32> to vector<2x8x1xf32>
    %3 = vector.extract_strided_slice %1 {offsets = [0, 0, 0], sizes = [2, 1, 128], strides = [1, 1, 1]} : vector<2x8x128xf32> to vector<2x1x128xf32>
    %4 = vector.broadcast %2 : vector<2x8x1xf32> to vector<2x8x128xf32>
    %5 = vector.broadcast %3 : vector<2x1x128xf32> to vector<2x8x128xf32>
    %6 = arith.mulf %4, %5 : vector<2x8x128xf32>
    %7 = vector.extract_strided_slice %0 {offsets = [0, 0, 1], sizes = [2, 8, 1], strides = [1, 1, 1]} : vector<2x8x8xf32> to vector<2x8x1xf32>
    %8 = vector.extract_strided_slice %1 {offsets = [0, 1, 0], sizes = [2, 1, 128], strides = [1, 1, 1]} : vector<2x8x128xf32> to vector<2x1x128xf32>
    %9 = vector.broadcast %7 : vector<2x8x1xf32> to vector<2x8x128xf32>
    %10 = vector.broadcast %8 : vector<2x1x128xf32> to vector<2x8x128xf32>
    %11 = arith.mulf %9, %10 : vector<2x8x128xf32>
    %12 = arith.addf %6, %11 : vector<2x8x128xf32>
    %13 = vector.extract_strided_slice %0 {offsets = [0, 0, 2], sizes = [2, 8, 1], strides = [1, 1, 1]} : vector<2x8x8xf32> to vector<2x8x1xf32>
    %14 = vector.extract_strided_slice %1 {offsets = [0, 2, 0], sizes = [2, 1, 128], strides = [1, 1, 1]} : vector<2x8x128xf32> to vector<2x1x128xf32>
    %15 = vector.broadcast %13 : vector<2x8x1xf32> to vector<2x8x128xf32>
    %16 = vector.broadcast %14 : vector<2x1x128xf32> to vector<2x8x128xf32>
    %17 = arith.mulf %15, %16 : vector<2x8x128xf32>
    %18 = arith.addf %12, %17 : vector<2x8x128xf32>
    %19 = vector.extract_strided_slice %0 {offsets = [0, 0, 3], sizes = [2, 8, 1], strides = [1, 1, 1]} : vector<2x8x8xf32> to vector<2x8x1xf32>
    %20 = vector.extract_strided_slice %1 {offsets = [0, 3, 0], sizes = [2, 1, 128], strides = [1, 1, 1]} : vector<2x8x128xf32> to vector<2x1x128xf32>
    %21 = vector.broadcast %19 : vector<2x8x1xf32> to vector<2x8x128xf32>
    %22 = vector.broadcast %20 : vector<2x1x128xf32> to vector<2x8x128xf32>
    %23 = arith.mulf %21, %22 : vector<2x8x128xf32>
    %24 = arith.addf %18, %23 : vector<2x8x128xf32>
    %25 = vector.extract_strided_slice %0 {offsets = [0, 0, 4], sizes = [2, 8, 1], strides = [1, 1, 1]} : vector<2x8x8xf32> to vector<2x8x1xf32>
    %26 = vector.extract_strided_slice %1 {offsets = [0, 4, 0], sizes = [2, 1, 128], strides = [1, 1, 1]} : vector<2x8x128xf32> to vector<2x1x128xf32>
    %27 = vector.broadcast %25 : vector<2x8x1xf32> to vector<2x8x128xf32>
    %28 = vector.broadcast %26 : vector<2x1x128xf32> to vector<2x8x128xf32>
    %29 = arith.mulf %27, %28 : vector<2x8x128xf32>
    %30 = arith.addf %24, %29 : vector<2x8x128xf32>
    %31 = vector.extract_strided_slice %0 {offsets = [0, 0, 5], sizes = [2, 8, 1], strides = [1, 1, 1]} : vector<2x8x8xf32> to vector<2x8x1xf32>
    %32 = vector.extract_strided_slice %1 {offsets = [0, 5, 0], sizes = [2, 1, 128], strides = [1, 1, 1]} : vector<2x8x128xf32> to vector<2x1x128xf32>
    %33 = vector.broadcast %31 : vector<2x8x1xf32> to vector<2x8x128xf32>
    %34 = vector.broadcast %32 : vector<2x1x128xf32> to vector<2x8x128xf32>
    %35 = arith.mulf %33, %34 : vector<2x8x128xf32>
    %36 = arith.addf %30, %35 : vector<2x8x128xf32>
    %37 = vector.extract_strided_slice %0 {offsets = [0, 0, 6], sizes = [2, 8, 1], strides = [1, 1, 1]} : vector<2x8x8xf32> to vector<2x8x1xf32>
    %38 = vector.extract_strided_slice %1 {offsets = [0, 6, 0], sizes = [2, 1, 128], strides = [1, 1, 1]} : vector<2x8x128xf32> to vector<2x1x128xf32>
    %39 = vector.broadcast %37 : vector<2x8x1xf32> to vector<2x8x128xf32>
    %40 = vector.broadcast %38 : vector<2x1x128xf32> to vector<2x8x128xf32>
    %41 = arith.mulf %39, %40 : vector<2x8x128xf32>
    %42 = arith.addf %36, %41 : vector<2x8x128xf32>
    %43 = vector.extract_strided_slice %0 {offsets = [0, 0, 7], sizes = [2, 8, 1], strides = [1, 1, 1]} : vector<2x8x8xf32> to vector<2x8x1xf32>
    %44 = vector.extract_strided_slice %1 {offsets = [0, 7, 0], sizes = [2, 1, 128], strides = [1, 1, 1]} : vector<2x8x128xf32> to vector<2x1x128xf32>
    %45 = vector.broadcast %43 : vector<2x8x1xf32> to vector<2x8x128xf32>
    %46 = vector.broadcast %44 : vector<2x1x128xf32> to vector<2x8x128xf32>
    %47 = arith.mulf %45, %46 : vector<2x8x128xf32>
    %48 = arith.addf %42, %47 : vector<2x8x128xf32>
    %49 = vector.shape_cast %48 : vector<2x8x128xf32> to vector<16x128xf32>
    %c0_5 = arith.constant 0 : index
    %c0_6 = arith.constant 0 : index
    %c0_7 = arith.constant 0 : index
    %50 = vector.load %arg3[%c0_5, %c0_6, %c0_7] : memref<2x8x128xf32, #tpu.memory_space<vmem>>, vector<2x8x128xf32>
    %51 = vector.shape_cast %50 : vector<2x8x128xf32> to vector<16x128xf32>
    %52 = arith.truncf %49 : vector<16x128xf32> to vector<16x128xbf16>
    %c0_8 = arith.constant 0 : index
    %c0_9 = arith.constant 0 : index
    %53 = vector.load %arg4[%c0_8, %c0_9] : memref<128x384xbf16, #tpu.memory_space<vmem>>, vector<128x384xbf16>
    %cst = arith.constant dense<0.000000e+00> : vector<16x384xf32>
    %54 = tpu.matmul %52, %53, %cst {dimension_numbers = #tpu.dot_dimension_numbers<[1], [0], [0], [1], [0, 0, 1, 1], [], []>} : vector<16x128xbf16>, vector<128x384xbf16>, vector<16x384xf32> -> vector<16x384xf32>
    %c0_10 = arith.constant 0 : index
    %c0_11 = arith.constant 0 : index
    %55 = vector.load %arg7[%c0_10, %c0_11] : memref<1x384xf32, #tpu.memory_space<vmem>>, vector<1x384xf32>
    %56 = vector.broadcast %55 : vector<1x384xf32> to vector<16x384xf32>
    %57 = arith.addf %54, %56 : vector<16x384xf32>
    %58 = arith.truncf %51 : vector<16x128xf32> to vector<16x128xbf16>
    %c0_12 = arith.constant 0 : index
    %c0_13 = arith.constant 0 : index
    %59 = vector.load %arg5[%c0_12, %c0_13] : memref<128x256xbf16, #tpu.memory_space<vmem>>, vector<128x256xbf16>
    %cst_14 = arith.constant dense<0.000000e+00> : vector<16x256xf32>
    %60 = tpu.matmul %58, %59, %cst_14 {dimension_numbers = #tpu.dot_dimension_numbers<[1], [0], [0], [1], [0, 0, 1, 1], [], []>} : vector<16x128xbf16>, vector<128x256xbf16>, vector<16x256xf32> -> vector<16x256xf32>
    %61 = vector.extract_strided_slice %57 {offsets = [0, 0], sizes = [16, 128], strides = [1, 1]} : vector<16x384xf32> to vector<16x128xf32>
    %62 = vector.extract_strided_slice %60 {offsets = [0, 0], sizes = [16, 128], strides = [1, 1]} : vector<16x256xf32> to vector<16x128xf32>
    %63 = arith.addf %61, %62 : vector<16x128xf32>
    %64 = vector.extract_strided_slice %57 {offsets = [0, 128], sizes = [16, 128], strides = [1, 1]} : vector<16x384xf32> to vector<16x128xf32>
    %65 = vector.extract_strided_slice %60 {offsets = [0, 128], sizes = [16, 128], strides = [1, 1]} : vector<16x256xf32> to vector<16x128xf32>
    %66 = arith.addf %64, %65 : vector<16x128xf32>
    %67 = vector.extract_strided_slice %57 {offsets = [0, 256], sizes = [16, 128], strides = [1, 1]} : vector<16x384xf32> to vector<16x128xf32>
    %cst_15 = arith.constant 5.000000e-01 : f32
    %68 = vector.broadcast %cst_15 : f32 to vector<16x128xf32>
    %69 = arith.mulf %68, %63 : vector<16x128xf32>
    %70 = math.tanh %69 : vector<16x128xf32>
    %cst_16 = arith.constant 1.000000e+00 : f32
    %71 = vector.broadcast %cst_16 : f32 to vector<16x128xf32>
    %72 = arith.addf %71, %70 : vector<16x128xf32>
    %cst_17 = arith.constant 5.000000e-01 : f32
    %73 = vector.broadcast %cst_17 : f32 to vector<16x128xf32>
    %74 = arith.mulf %73, %72 : vector<16x128xf32>
    %cst_18 = arith.constant 5.000000e-01 : f32
    %75 = vector.broadcast %cst_18 : f32 to vector<16x128xf32>
    %76 = arith.mulf %75, %66 : vector<16x128xf32>
    %77 = math.tanh %76 : vector<16x128xf32>
    %cst_19 = arith.constant 1.000000e+00 : f32
    %78 = vector.broadcast %cst_19 : f32 to vector<16x128xf32>
    %79 = arith.addf %78, %77 : vector<16x128xf32>
    %cst_20 = arith.constant 5.000000e-01 : f32
    %80 = vector.broadcast %cst_20 : f32 to vector<16x128xf32>
    %81 = arith.mulf %80, %79 : vector<16x128xf32>
    %82 = arith.mulf %74, %51 : vector<16x128xf32>
    %83 = arith.truncf %82 : vector<16x128xf32> to vector<16x128xbf16>
    %c0_21 = arith.constant 0 : index
    %c0_22 = arith.constant 0 : index
    %84 = vector.load %arg6[%c0_21, %c0_22] : memref<128x128xbf16, #tpu.memory_space<vmem>>, vector<128x128xbf16>
    %cst_23 = arith.constant dense<0.000000e+00> : vector<16x128xf32>
    %85 = tpu.matmul %83, %84, %cst_23 {dimension_numbers = #tpu.dot_dimension_numbers<[1], [0], [0], [1], [0, 0, 1, 1], [], []>} : vector<16x128xbf16>, vector<128x128xbf16>, vector<16x128xf32> -> vector<16x128xf32>
    %86 = arith.addf %67, %85 : vector<16x128xf32>
    %87 = math.tanh %86 : vector<16x128xf32>
    %88 = arith.subf %87, %51 : vector<16x128xf32>
    %89 = arith.mulf %81, %88 : vector<16x128xf32>
    %90 = arith.addf %51, %89 : vector<16x128xf32>
    %91 = vector.shape_cast %90 : vector<16x128xf32> to vector<2x8x128xf32>
    %c0_24 = arith.constant 0 : index
    %c0_25 = arith.constant 0 : index
    %c0_26 = arith.constant 0 : index
    %92 = vector.load %arg8[%c0_24, %c0_25, %c0_26] : memref<2x8x128xf32, #tpu.memory_space<vmem>>, vector<2x8x128xf32>
    tpu.vector_store %arg8[%c0_24, %c0_25, %c0_26], %91 {strides = array<i32>} : memref<2x8x128xf32, #tpu.memory_space<vmem>>, vector<2x8x128xf32>,
    return
  }
  func.func @transform_0(%arg0: i32) -> (i32, i32, i32) {
    %c0_i32 = arith.constant 0 : i32
    %c0_i32_0 = arith.constant 0 : i32
    %c0_i32_1 = arith.constant 0 : i32
    return %arg0, %c0_i32, %c0_i32_0 : i32, i32, i32
  }
  func.func @transform_1(%arg0: i32) -> (i32, i32, i32) {
    %c0_i32 = arith.constant 0 : i32
    %c0_i32_0 = arith.constant 0 : i32
    %c0_i32_1 = arith.constant 0 : i32
    return %arg0, %c0_i32, %c0_i32_0 : i32, i32, i32
  }
  func.func @transform_2(%arg0: i32) -> (i32, i32, i32) {
    %c0_i32 = arith.constant 0 : i32
    %c0_i32_0 = arith.constant 0 : i32
    %c0_i32_1 = arith.constant 0 : i32
    return %arg0, %c0_i32, %c0_i32_0 : i32, i32, i32
  }
  func.func @transform_3(%arg0: i32) -> (i32, i32) {
    %c0_i32 = arith.constant 0 : i32
    %c0_i32_0 = arith.constant 0 : i32
    %c0_i32_1 = arith.constant 0 : i32
    return %c0_i32, %c0_i32_0 : i32, i32
  }
  func.func @transform_4(%arg0: i32) -> (i32, i32) {
    %c0_i32 = arith.constant 0 : i32
    %c0_i32_0 = arith.constant 0 : i32
    %c0_i32_1 = arith.constant 0 : i32
    return %c0_i32, %c0_i32_0 : i32, i32
  }
  func.func @transform_5(%arg0: i32) -> (i32, i32) {
    %c0_i32 = arith.constant 0 : i32
    %c0_i32_0 = arith.constant 0 : i32
    %c0_i32_1 = arith.constant 0 : i32
    return %c0_i32, %c0_i32_0 : i32, i32
  }
  func.func @transform_6(%arg0: i32) -> (i32, i32) {
    %c0_i32 = arith.constant 0 : i32
    %c0_i32_0 = arith.constant 0 : i32
    %c0_i32_1 = arith.constant 0 : i32
    return %c0_i32, %c0_i32_0 : i32, i32
  }
  func.func @transform_7(%arg0: i32) -> (i32, i32, i32) {
    %c0_i32 = arith.constant 0 : i32
    %c0_i32_0 = arith.constant 0 : i32
    %c0_i32_1 = arith.constant 0 : i32
    return %arg0, %c0_i32, %c0_i32_0 : i32, i32, i32
  }
}

module attributes {stable_mosaic.version = 11 : i64} {
  func.func @_propogator_kernel(%arg0: i32, %arg1: memref<2x8x8xf32, #tpu.memory_space<vmem>>, %arg2: memref<2x8x128xf32, #tpu.memory_space<vmem>>, %arg3: memref<2x8x128xf32, #tpu.memory_space<vmem>>, %arg4: memref<128x384xbf16, #tpu.memory_space<vmem>>, %arg5: memref<128x256xbf16, #tpu.memory_space<vmem>>, %arg6: memref<128x128xbf16, #tpu.memory_space<vmem>>, %arg7: memref<1x384xf32, #tpu.memory_space<vmem>>, %arg8: memref<2x8x128xf32, #tpu.memory_space<vmem>>) attributes {dimension_semantics = [#tpu.dimension_semantics<parallel>], iteration_bounds = array<i64: 1>, scalar_prefetch = 0 : i64, scratch_operands = 0 : i64, tpu.core_type = #tpu.core_type<tc>, window_params = [{transform_indices = @transform_0, window_bounds = array<i64: 2, 8, 8>}, {transform_indices = @transform_1, window_bounds = array<i64: 2, 8, 128>}, {transform_indices = @transform_2, window_bounds = array<i64: 2, 8, 128>}, {pipeline_mode = #tpu.pipeline_mode<synchronous>, transform_indices = @transform_3, window_bounds = array<i64: 128, 384>}, {pipeline_mode = #tpu.pipeline_mode<synchronous>, transform_indices = @transform_4, window_bounds = array<i64: 128, 256>}, {pipeline_mode = #tpu.pipeline_mode<synchronous>, transform_indices = @transform_5, window_bounds = array<i64: 128, 128>}, {pipeline_mode = #tpu.pipeline_mode<synchronous>, transform_indices = @transform_6, window_bounds = array<i64: 1, 384>}, {transform_indices = @transform_7, window_bounds = array<i64: 2, 8, 128>}]} {
    %c0 = arith.constant 0 : index
    %c0_0 = arith.constant 0 : index
    %c0_1 = arith.constant 0 : index
    %0 = vector.load %arg1[%c0, %c0_0, %c0_1] : memref<2x8x8xf32, #tpu.memory_space<vmem>>, vector<2x8x8xf32>
    %c0_2 = arith.constant 0 : index
    %c0_3 = arith.constant 0 : index
    %c0_4 = arith.constant 0 : index
    %1 = vector.load %arg2[%c0_2, %c0_3, %c0_4] : memref<2x8x128xf32, #tpu.memory_space<vmem>>, vector<2x8x128xf32>
    %2 = vector.extract_strided_slice %0 {offsets = [0, 0, 0], sizes = [2, 8, 1], strides = [1, 1, 1]} : vector<2x8x8xf32> to vector<2x8x1xf32>
    %3 = vector.extract_strided_slice %1 {offsets = [0, 0, 0], sizes = [2, 1, 128], strides = [1, 1, 1]} : vector<2x8x128xf32> to vector<2x1x128xf32>
    %4 = vector.broadcast %2 : vector<2x8x1xf32> to vector<2x8x128xf32>
    %5 = vector.broadcast %3 : vector<2x1x128xf32> to vector<2x8x128xf32>
    %6 = arith.mulf %4, %5 : vector<2x8x128xf32>
    %7 = vector.extract_strided_slice %0 {offsets = [0, 0, 1], sizes = [2, 8, 1], strides = [1, 1, 1]} : vector<2x8x8xf32> to vector<2x8x1xf32>
    %8 = vector.extract_strided_slice %1 {offsets = [0, 1, 0], sizes = [2, 1, 128], strides = [1, 1, 1]} : vector<2x8x128xf32> to vector<2x1x128xf32>
    %9 = vector.broadcast %7 : vector<2x8x1xf32> to vector<2x8x128xf32>
    %10 = vector.broadcast %8 : vector<2x1x128xf32> to vector<2x8x128xf32>
    %11 = arith.mulf %9, %10 : vector<2x8x128xf32>
    %12 = arith.addf %6, %11 : vector<2x8x128xf32>
    %13 = vector.extract_strided_slice %0 {offsets = [0, 0, 2], sizes = [2, 8, 1], strides = [1, 1, 1]} : vector<2x8x8xf32> to vector<2x8x1xf32>
    %14 = vector.extract_strided_slice %1 {offsets = [0, 2, 0], sizes = [2, 1, 128], strides = [1, 1, 1]} : vector<2x8x128xf32> to vector<2x1x128xf32>
    %15 = vector.broadcast %13 : vector<2x8x1xf32> to vector<2x8x128xf32>
    %16 = vector.broadcast %14 : vector<2x1x128xf32> to vector<2x8x128xf32>
    %17 = arith.mulf %15, %16 : vector<2x8x128xf32>
    %18 = arith.addf %12, %17 : vector<2x8x128xf32>
    %19 = vector.extract_strided_slice %0 {offsets = [0, 0, 3], sizes = [2, 8, 1], strides = [1, 1, 1]} : vector<2x8x8xf32> to vector<2x8x1xf32>
    %20 = vector.extract_strided_slice %1 {offsets = [0, 3, 0], sizes = [2, 1, 128], strides = [1, 1, 1]} : vector<2x8x128xf32> to vector<2x1x128xf32>
    %21 = vector.broadcast %19 : vector<2x8x1xf32> to vector<2x8x128xf32>
    %22 = vector.broadcast %20 : vector<2x1x128xf32> to vector<2x8x128xf32>
    %23 = arith.mulf %21, %22 : vector<2x8x128xf32>
    %24 = arith.addf %18, %23 : vector<2x8x128xf32>
    %25 = vector.extract_strided_slice %0 {offsets = [0, 0, 4], sizes = [2, 8, 1], strides = [1, 1, 1]} : vector<2x8x8xf32> to vector<2x8x1xf32>
    %26 = vector.extract_strided_slice %1 {offsets = [0, 4, 0], sizes = [2, 1, 128], strides = [1, 1, 1]} : vector<2x8x128xf32> to vector<2x1x128xf32>
    %27 = vector.broadcast %25 : vector<2x8x1xf32> to vector<2x8x128xf32>
    %28 = vector.broadcast %26 : vector<2x1x128xf32> to vector<2x8x128xf32>
    %29 = arith.mulf %27, %28 : vector<2x8x128xf32>
    %30 = arith.addf %24, %29 : vector<2x8x128xf32>
    %31 = vector.extract_strided_slice %0 {offsets = [0, 0, 5], sizes = [2, 8, 1], strides = [1, 1, 1]} : vector<2x8x8xf32> to vector<2x8x1xf32>
    %32 = vector.extract_strided_slice %1 {offsets = [0, 5, 0], sizes = [2, 1, 128], strides = [1, 1, 1]} : vector<2x8x128xf32> to vector<2x1x128xf32>
    %33 = vector.broadcast %31 : vector<2x8x1xf32> to vector<2x8x128xf32>
    %34 = vector.broadcast %32 : vector<2x1x128xf32> to vector<2x8x128xf32>
    %35 = arith.mulf %33, %34 : vector<2x8x128xf32>
    %36 = arith.addf %30, %35 : vector<2x8x128xf32>
    %37 = vector.extract_strided_slice %0 {offsets = [0, 0, 6], sizes = [2, 8, 1], strides = [1, 1, 1]} : vector<2x8x8xf32> to vector<2x8x1xf32>
    %38 = vector.extract_strided_slice %1 {offsets = [0, 6, 0], sizes = [2, 1, 128], strides = [1, 1, 1]} : vector<2x8x128xf32> to vector<2x1x128xf32>
    %39 = vector.broadcast %37 : vector<2x8x1xf32> to vector<2x8x128xf32>
    %40 = vector.broadcast %38 : vector<2x1x128xf32> to vector<2x8x128xf32>
    %41 = arith.mulf %39, %40 : vector<2x8x128xf32>
    %42 = arith.addf %36, %41 : vector<2x8x128xf32>
    %43 = vector.extract_strided_slice %0 {offsets = [0, 0, 7], sizes = [2, 8, 1], strides = [1, 1, 1]} : vector<2x8x8xf32> to vector<2x8x1xf32>
    %44 = vector.extract_strided_slice %1 {offsets = [0, 7, 0], sizes = [2, 1, 128], strides = [1, 1, 1]} : vector<2x8x128xf32> to vector<2x1x128xf32>
    %45 = vector.broadcast %43 : vector<2x8x1xf32> to vector<2x8x128xf32>
    %46 = vector.broadcast %44 : vector<2x1x128xf32> to vector<2x8x128xf32>
    %47 = arith.mulf %45, %46 : vector<2x8x128xf32>
    %48 = arith.addf %42, %47 : vector<2x8x128xf32>
    %49 = vector.shape_cast %48 : vector<2x8x128xf32> to vector<16x128xf32>
    %c0_5 = arith.constant 0 : index
    %c0_6 = arith.constant 0 : index
    %c0_7 = arith.constant 0 : index
    %50 = vector.load %arg3[%c0_5, %c0_6, %c0_7] : memref<2x8x128xf32, #tpu.memory_space<vmem>>, vector<2x8x128xf32>
    %51 = vector.shape_cast %50 : vector<2x8x128xf32> to vector<16x128xf32>
    %52 = arith.truncf %49 : vector<16x128xf32> to vector<16x128xbf16>
    %c0_8 = arith.constant 0 : index
    %c0_9 = arith.constant 0 : index
    %53 = vector.load %arg4[%c0_8, %c0_9] : memref<128x384xbf16, #tpu.memory_space<vmem>>, vector<128x384xbf16>
    %cst = arith.constant dense<0.000000e+00> : vector<16x384xf32>
    %54 = tpu.matmul %52, %53, %cst {dimension_numbers = #tpu.dot_dimension_numbers<[1], [0], [0], [1], [0, 0, 1, 1], [], []>} : vector<16x128xbf16>, vector<128x384xbf16>, vector<16x384xf32> -> vector<16x384xf32>
    %c0_10 = arith.constant 0 : index
    %c0_11 = arith.constant 0 : index
    %55 = vector.load %arg7[%c0_10, %c0_11] : memref<1x384xf32, #tpu.memory_space<vmem>>, vector<1x384xf32>
    %56 = vector.broadcast %55 : vector<1x384xf32> to vector<16x384xf32>
    %57 = arith.addf %54, %56 : vector<16x384xf32>
    %58 = arith.truncf %51 : vector<16x128xf32> to vector<16x128xbf16>
    %c0_12 = arith.constant 0 : index
    %c0_13 = arith.constant 0 : index
    %59 = vector.load %arg5[%c0_12, %c0_13] : memref<128x256xbf16, #tpu.memory_space<vmem>>, vector<128x256xbf16>
    %cst_14 = arith.constant dense<0.000000e+00> : vector<16x256xf32>
    %60 = tpu.matmul %58, %59, %cst_14 {dimension_numbers = #tpu.dot_dimension_numbers<[1], [0], [0], [1], [0, 0, 1, 1], [], []>} : vector<16x128xbf16>, vector<128x256xbf16>, vector<16x256xf32> -> vector<16x256xf32>
    %61 = vector.extract_strided_slice %57 {offsets = [0, 0], sizes = [16, 128], strides = [1, 1]} : vector<16x384xf32> to vector<16x128xf32>
    %62 = vector.extract_strided_slice %60 {offsets = [0, 0], sizes = [16, 128], strides = [1, 1]} : vector<16x256xf32> to vector<16x128xf32>
    %63 = arith.addf %61, %62 : vector<16x128xf32>
    %64 = vector.extract_strided_slice %57 {offsets = [0, 128], sizes = [16, 128], strides = [1, 1]} : vector<16x384xf32> to vector<16x128xf32>
    %65 = vector.extract_strided_slice %60 {offsets = [0, 128], sizes = [16, 128], strides = [1, 1]} : vector<16x256xf32> to vector<16x128xf32>
    %66 = arith.addf %64, %65 : vector<16x128xf32>
    %67 = vector.extract_strided_slice %57 {offsets = [0, 256], sizes = [16, 128], strides = [1, 1]} : vector<16x384xf32> to vector<16x128xf32>
    %cst_15 = arith.constant 5.000000e-01 : f32
    %68 = vector.broadcast %cst_15 : f32 to vector<16x128xf32>
    %69 = arith.mulf %68, %63 : vector<16x128xf32>
    %70 = math.tanh %69 : vector<16x128xf32>
    %cst_16 = arith.constant 1.000000e+00 : f32
    %71 = vector.broadcast %cst_16 : f32 to vector<16x128xf32>
    %72 = arith.addf %71, %70 : vector<16x128xf32>
    %cst_17 = arith.constant 5.000000e-01 : f32
    %73 = vector.broadcast %cst_17 : f32 to vector<16x128xf32>
    %74 = arith.mulf %73, %72 : vector<16x128xf32>
    %cst_18 = arith.constant 5.000000e-01 : f32
    %75 = vector.broadcast %cst_18 : f32 to vector<16x128xf32>
    %76 = arith.mulf %75, %66 : vector<16x128xf32>
    %77 = math.tanh %76 : vector<16x128xf32>
    %cst_19 = arith.constant 1.000000e+00 : f32
    %78 = vector.broadcast %cst_19 : f32 to vector<16x128xf32>
    %79 = arith.addf %78, %77 : vector<16x128xf32>
    %cst_20 = arith.constant 5.000000e-01 : f32
    %80 = vector.broadcast %cst_20 : f32 to vector<16x128xf32>
    %81 = arith.mulf %80, %79 : vector<16x128xf32>
    %82 = arith.mulf %74, %51 : vector<16x128xf32>
    %83 = arith.truncf %82 : vector<16x128xf32> to vector<16x128xbf16>
    %c0_21 = arith.constant 0 : index
    %c0_22 = arith.constant 0 : index
    %84 = vector.load %arg6[%c0_21, %c0_22] : memref<128x128xbf16, #tpu.memory_space<vmem>>, vector<128x128xbf16>
    %cst_23 = arith.constant dense<0.000000e+00> : vector<16x128xf32>
    %85 = tpu.matmul %83, %84, %cst_23 {dimension_numbers = #tpu.dot_dimension_numbers<[1], [0], [0], [1], [0, 0, 1, 1], [], []>} : vector<16x128xbf16>, vector<128x128xbf16>, vector<16x128xf32> -> vector<16x128xf32>
    %86 = arith.addf %67, %85 : vector<16x128xf32>
    %87 = math.tanh %86 : vector<16x128xf32>
    %88 = arith.subf %87, %51 : vector<16x128xf32>
    %89 = arith.mulf %81, %88 : vector<16x128xf32>
    %90 = arith.addf %51, %89 : vector<16x128xf32>
    %91 = vector.shape_cast %90 : vector<16x128xf32> to vector<2x8x128xf32>
    %c0_24 = arith.constant 0 : index
    %c0_25 = arith.constant 0 : index
    %c0_26 = arith.constant 0 : index
    %92 = vector.load %arg8[%c0_24, %c0_25, %c0_26] : memref<2x8x128xf32, #tpu.memory_space<vmem>>, vector<2x8x128xf32>
    tpu.vector_store %arg8[%c0_24, %c0_25, %c0_26], %91 {strides = array<i32>} : memref<2x8x128xf32, #tpu.memory_space<vmem>>, vector<2x8x128xf32>,
    return
  }
  func.func @transform_0(%arg0: i32) -> (i32, i32, i32) {
    %c0_i32 = arith.constant 0 : i32
    %c0_i32_0 = arith.constant 0 : i32
    %c0_i32_1 = arith.constant 0 : i32
    return %arg0, %c0_i32, %c0_i32_0 : i32, i32, i32
  }
  func.func @transform_1(%arg0: i32) -> (i32, i32, i32) {
    %c0_i32 = arith.constant 0 : i32
    %c0_i32_0 = arith.constant 0 : i32
    %c0_i32_1 = arith.constant 0 : i32
    return %arg0, %c0_i32, %c0_i32_0 : i32, i32, i32
  }
  func.func @transform_2(%arg0: i32) -> (i32, i32, i32) {
    %c0_i32 = arith.constant 0 : i32
    %c0_i32_0 = arith.constant 0 : i32
    %c0_i32_1 = arith.constant 0 : i32
    return %arg0, %c0_i32, %c0_i32_0 : i32, i32, i32
  }
  func.func @transform_3(%arg0: i32) -> (i32, i32) {
    %c0_i32 = arith.constant 0 : i32
    %c0_i32_0 = arith.constant 0 : i32
    %c0_i32_1 = arith.constant 0 : i32
    return %c0_i32, %c0_i32_0 : i32, i32
  }
  func.func @transform_4(%arg0: i32) -> (i32, i32) {
    %c0_i32 = arith.constant 0 : i32
    %c0_i32_0 = arith.constant 0 : i32
    %c0_i32_1 = arith.constant 0 : i32
    return %c0_i32, %c0_i32_0 : i32, i32
  }
  func.func @transform_5(%arg0: i32) -> (i32, i32) {
    %c0_i32 = arith.constant 0 : i32
    %c0_i32_0 = arith.constant 0 : i32
    %c0_i32_1 = arith.constant 0 : i32
    return %c0_i32, %c0_i32_0 : i32, i32
  }
  func.func @transform_6(%arg0: i32) -> (i32, i32) {
    %c0_i32 = arith.constant 0 : i32
    %c0_i32_0 = arith.constant 0 : i32
    %c0_i32_1 = arith.constant 0 : i32
    return %c0_i32, %c0_i32_0 : i32, i32
  }
  func.func @transform_7(%arg0: i32) -> (i32, i32, i32) {
    %c0_i32 = arith.constant 0 : i32
    %c0_i32_0 = arith.constant 0 : i32
    %c0_i32_1 = arith.constant 0 : i32
    return %arg0, %c0_i32, %c0_i32_0 : i32, i32, i32
  }
}

</mosaic_0001>

<llo_original>
// kernel: tpu_custom_call.1
$region0: #{tpu_custom_call.1}
  #allocation0 [shape = 'u32[]', space=smem, size = 0x4, offset = 0x4, fixed_abs, tag = 'smem constant byte address 0x4 - core index']
  #allocation1 [shape = 'u32[144,128]{1,0:T(1,128)}', space=vmem, size = 0x12000, scoped, tag = 'internal scratch']
  %s0 = inlined_call_operand.hbm [shape: f32[2,8,8], index: 0, kind: input, shape index: {}]
  %s1 = inlined_call_operand.hbm [shape: f32[2,8,128], index: 1, kind: input, shape index: {}]
  %s2 = inlined_call_operand.hbm [shape: f32[2,8,128], index: 2, kind: input, shape index: {}]
  %s3 = inlined_call_operand.hbm [shape: bf16[128,384], index: 3, kind: input, shape index: {}]
  %s4 = inlined_call_operand.hbm [shape: bf16[128,256], index: 4, kind: input, shape index: {}]
  %s5 = inlined_call_operand.hbm [shape: bf16[128,128], index: 5, kind: input, shape index: {}]
  %s6 = inlined_call_operand.vmem [shape: f32[1,384], index: 6, kind: input, shape index: {}]
  %s7 = inlined_call_operand.hbm [shape: f32[2,8,128], index: 7, kind: output, shape index: {}]
  %s8 = sld [smem:[#allocation0]]
  $region62: #{tpu_custom_call.1} parent=0
    _
  %s10 = ssub.s32 1, %s8
  %s11 = scalar_select 0, %s10, %s8
  $region1: #{tpu_custom_call.1} parent=0
    #allocation2 [shape = 'u8[8192]{0}', space=vmem, size = 0x2000, scoped, tag = 'input window, operand 0, single buffered']
    #allocation3 [shape = 's32[1]{0}', space=sflag, size = 0x4, scoped, tag = 'scoped memory for tpu_custom_call.1']
    #allocation4 [shape = 's32[1]{0}', space=sflag, size = 0x4, scoped, tag = 'scoped memory for tpu_custom_call.1']
    #allocation5 [shape = 'u8[8192]{0}', space=vmem, size = 0x2000, scoped, tag = 'input window, operand 1, single buffered']
    #allocation6 [shape = 's32[1]{0}', space=sflag, size = 0x4, scoped, tag = 'scoped memory for tpu_custom_call.1']
    #allocation7 [shape = 'u8[8192]{0}', space=vmem, size = 0x2000, scoped, tag = 'input window, operand 2, single buffered']
    #allocation8 [shape = 'u8[98304]{0}', space=vmem, size = 0x18000, scoped, tag = 'input window, operand 3, single buffered']
    #allocation9 [shape = 's32[1]{0}', space=sflag, size = 0x4, scoped, tag = 'scoped memory for tpu_custom_call.1']
    #allocation10 [shape = 'u8[65536]{0}', space=vmem, size = 0x10000, scoped, tag = 'input window, operand 4, single buffered']
    #allocation11 [shape = 'u8[32768]{0}', space=vmem, size = 0x8000, scoped, tag = 'input window, operand 5, single buffered']
    #allocation12 [shape = 's32[1]{0}', space=sflag, size = 0x4, scoped, tag = 'scoped memory for tpu_custom_call.1']
    #allocation13 [shape = 'u8[8192]{0}', space=vmem, size = 0x2000, scoped, tag = 'output window, operand 0, single buffered']
    %12 = vsyncpa [#allocation3], 0
    %13 = vsyncpa [#allocation6], 0
    %14 = vsyncpa [#allocation9], 0
    %15 = vsyncpa [#allocation12], 0
    %16 = vsyncpa [#allocation4], 0
    // Predicated region
    $region2: #{tpu_custom_call.1} parent=1 // pred_check
      _
    $region3: #{tpu_custom_call.1} parent=1 // pred_check_branch
      %18 = sbr.rel (0) target = $region5
    $region4: #{tpu_custom_call.1} parent=1 // pred_region
      %s20 = ssub.s32 256, 256
      %21 = vsyncadd [#allocation3], %s20
      %s22 = sshll.u32 [#allocation2], 4
      %s23 = int_to_ptr.vmem [resolvable:$true] %s22
      %28 = dma.hbm_to_vmem [thread:$0]  %s0, 256, %s23, [#allocation3], 128, 128, 8
    $region5: #{tpu_custom_call.1} parent=1 // pred_fallthru
      _
    // Predicated region
    $region6: #{tpu_custom_call.1} parent=1 // pred_check
      _
    $region7: #{tpu_custom_call.1} parent=1 // pred_check_branch
      %30 = sbr.rel (0) target = $region9
    $region8: #{tpu_custom_call.1} parent=1 // pred_region
      %s32 = ssub.s32 256, 256
      %33 = vsyncadd [#allocation6], %s32
      %s34 = sshll.u32 [#allocation5], 4
      %s35 = int_to_ptr.vmem [resolvable:$true] %s34
      %40 = dma.hbm_to_vmem [thread:$0]  %s1, 256, %s35, [#allocation6], 128, 128, 8
    $region9: #{tpu_custom_call.1} parent=1 // pred_fallthru
      _
    // Predicated region
    $region10: #{tpu_custom_call.1} parent=1 // pred_check
      _
    $region11: #{tpu_custom_call.1} parent=1 // pred_check_branch
      %42 = sbr.rel (0) target = $region13
    $region12: #{tpu_custom_call.1} parent=1 // pred_region
      %s44 = ssub.s32 256, 256
      %45 = vsyncadd [#allocation6], %s44
      %s46 = sshll.u32 [#allocation7], 4
      %s47 = int_to_ptr.vmem [resolvable:$true] %s46
      %52 = dma.hbm_to_vmem [thread:$0]  %s2, 256, %s47, [#allocation6], 128, 128, 8
    $region13: #{tpu_custom_call.1} parent=1 // pred_fallthru
      _
    // Predicated region
    $region14: #{tpu_custom_call.1} parent=1 // pred_check
      _
    $region15: #{tpu_custom_call.1} parent=1 // pred_check_branch
      %54 = sbr.rel (0) target = $region17
    $region16: #{tpu_custom_call.1} parent=1 // pred_region
      %s56 = ssub.s32 3072, 3072
      %57 = vsyncadd [#allocation9], %s56
      %s58 = sshll.u32 [#allocation8], 4
      %s59 = int_to_ptr.vmem [resolvable:$true] %s58
      %64 = dma.hbm_to_vmem [thread:$0]  %s3, 3072, %s59, [#allocation9], 192, 192, 12
    $region17: #{tpu_custom_call.1} parent=1 // pred_fallthru
      _
    // Predicated region
    $region18: #{tpu_custom_call.1} parent=1 // pred_check
      _
    $region19: #{tpu_custom_call.1} parent=1 // pred_check_branch
      %66 = sbr.rel (0) target = $region21
    $region20: #{tpu_custom_call.1} parent=1 // pred_region
      %s68 = ssub.s32 2048, 2048
      %69 = vsyncadd [#allocation9], %s68
      %s70 = sshll.u32 [#allocation10], 4
      %s71 = int_to_ptr.vmem [resolvable:$true] %s70
      %76 = dma.hbm_to_vmem [thread:$0]  %s4, 2048, %s71, [#allocation9], 128, 128, 8
    $region21: #{tpu_custom_call.1} parent=1 // pred_fallthru
      _
    // Predicated region
    $region22: #{tpu_custom_call.1} parent=1 // pred_check
      _
    $region23: #{tpu_custom_call.1} parent=1 // pred_check_branch
      %78 = sbr.rel (0) target = $region25
    $region24: #{tpu_custom_call.1} parent=1 // pred_region
      %s80 = ssub.s32 1024, 1024
      %81 = vsyncadd [#allocation12], %s80
      %s82 = sshll.u32 [#allocation11], 4
      %s83 = int_to_ptr.vmem [resolvable:$true] %s82
      %88 = dma.hbm_to_vmem [thread:$0]  %s5, 1024, %s83, [#allocation12], 64, 64, 4
    $region25: #{tpu_custom_call.1} parent=1 // pred_fallthru
      _
    // Predicated region
    $region26: #{tpu_custom_call.1} parent=1 // pred_check
      _
    $region27: #{tpu_custom_call.1} parent=1 // pred_check_branch
      %90 = sbr.rel (0) target = $region29
    $region28: #{tpu_custom_call.1} parent=1 // pred_region
      _
    $region29: #{tpu_custom_call.1} parent=1 // pred_fallthru
      _
    // Predicated region
    $region30: #{tpu_custom_call.1} parent=1 // pred_check
      _
    $region31: #{tpu_custom_call.1} parent=1 // pred_check_branch
      %92 = sbr.rel (0) target = $region33
    $region32: #{tpu_custom_call.1} parent=1 // pred_region
      %93 = dma.done [#allocation3], 256
    $region33: #{tpu_custom_call.1} parent=1 // pred_fallthru
      _
    // Predicated region
    $region34: #{tpu_custom_call.1} parent=1 // pred_check
      _
    $region35: #{tpu_custom_call.1} parent=1 // pred_check_branch
      %95 = sbr.rel (0) target = $region37
    $region36: #{tpu_custom_call.1} parent=1 // pred_region
      %96 = dma.done [#allocation6], 256
    $region37: #{tpu_custom_call.1} parent=1 // pred_fallthru
      _
    // Predicated region
    $region38: #{tpu_custom_call.1} parent=1 // pred_check
      _
    $region39: #{tpu_custom_call.1} parent=1 // pred_check_branch
      %98 = sbr.rel (0) target = $region41
    $region40: #{tpu_custom_call.1} parent=1 // pred_region
      %99 = dma.done [#allocation6], 256
    $region41: #{tpu_custom_call.1} parent=1 // pred_fallthru
      _
    // Predicated region
    $region42: #{tpu_custom_call.1} parent=1 // pred_check
      _
    $region43: #{tpu_custom_call.1} parent=1 // pred_check_branch
      %101 = sbr.rel (0) target = $region45
    $region44: #{tpu_custom_call.1} parent=1 // pred_region
      %102 = dma.done [#allocation9], 3072
    $region45: #{tpu_custom_call.1} parent=1 // pred_fallthru
      _
    // Predicated region
    $region46: #{tpu_custom_call.1} parent=1 // pred_check
      _
    $region47: #{tpu_custom_call.1} parent=1 // pred_check_branch
      %104 = sbr.rel (0) target = $region49
    $region48: #{tpu_custom_call.1} parent=1 // pred_region
      %105 = dma.done [#allocation9], 2048
    $region49: #{tpu_custom_call.1} parent=1 // pred_fallthru
      _
    // Predicated region
    $region50: #{tpu_custom_call.1} parent=1 // pred_check
      _
    $region51: #{tpu_custom_call.1} parent=1 // pred_check_branch
      %107 = sbr.rel (0) target = $region53
    $region52: #{tpu_custom_call.1} parent=1 // pred_region
      %108 = dma.done [#allocation12], 1024
    $region53: #{tpu_custom_call.1} parent=1 // pred_fallthru
      _
    %v110 = vld [vmem:[#allocation2] sm:$0xff]
    %v111 = vld [vmem:[#allocation2 + $0x8] sm:$0xff]
    %v112 = vld [vmem:[#allocation5] sm:$0xff]
    %v113 = vld [vmem:[#allocation5 + $0x8] sm:$0xff]
    %115 = vset.pattern.permute.xlu0 0
    %116 = vperm.xlu0 %115, %v110
    %v117 = vpop.permute.xlu0 %116
    %120 = vset.pattern.permute.xlu0 0
    %121 = vperm.xlu0 %120, %v111
    %v122 = vpop.permute.xlu0 %121
    %v124 = vlaneseq
    %v125 = vshrl.u32 %v124, 7
    %v126 = vsub.s32 0, %v125
    %v127 = vrot.slane %v112, %v126
    %v128 = vlaneseq
    %v129 = vshrl.u32 %v128, 7
    %v130 = vsub.s32 0, %v129
    %v131 = vrot.slane %v113, %v130
    %v132 = vmul.f32 %v117, %v127
    %v133 = vmul.f32 %v122, %v131
    %134 = vset.pattern.permute.xlu0 1
    %135 = vperm.xlu0 %134, %v110
    %v136 = vpop.permute.xlu0 %135
    %138 = vset.pattern.permute.xlu0 1
    %139 = vperm.xlu0 %138, %v111
    %v140 = vpop.permute.xlu0 %139
    %v142 = vlaneseq
    %v143 = vshrl.u32 %v142, 7
    %v144 = vsub.s32 1, %v143
    %v145 = vrot.slane %v112, %v144
    %v146 = vlaneseq
    %v147 = vshrl.u32 %v146, 7
    %v148 = vsub.s32 1, %v147
    %v149 = vrot.slane %v113, %v148
    %v150 = vmul.f32 %v136, %v145
    %v151 = vmul.f32 %v140, %v149
    %v152 = vadd.f32 %v132, %v150
    %v153 = vadd.f32 %v133, %v151
    %154 = vset.pattern.permute.xlu0 2
    %155 = vperm.xlu0 %154, %v110
    %v156 = vpop.permute.xlu0 %155
    %158 = vset.pattern.permute.xlu0 2
    %159 = vperm.xlu0 %158, %v111
    %v160 = vpop.permute.xlu0 %159
    %v162 = vlaneseq
    %v163 = vshrl.u32 %v162, 7
    %v164 = vsub.s32 2, %v163
    %v165 = vrot.slane %v112, %v164
    %v166 = vlaneseq
    %v167 = vshrl.u32 %v166, 7
    %v168 = vsub.s32 2, %v167
    %v169 = vrot.slane %v113, %v168
    %v170 = vmul.f32 %v156, %v165
    %v171 = vmul.f32 %v160, %v169
    %v172 = vadd.f32 %v152, %v170
    %v173 = vadd.f32 %v153, %v171
    %174 = vset.pattern.permute.xlu0 3
    %175 = vperm.xlu0 %174, %v110
    %v176 = vpop.permute.xlu0 %175
    %178 = vset.pattern.permute.xlu0 3
    %179 = vperm.xlu0 %178, %v111
    %v180 = vpop.permute.xlu0 %179
    %v182 = vlaneseq
    %v183 = vshrl.u32 %v182, 7
    %v184 = vsub.s32 3, %v183
    %v185 = vrot.slane %v112, %v184
    %v186 = vlaneseq
    %v187 = vshrl.u32 %v186, 7
    %v188 = vsub.s32 3, %v187
    %v189 = vrot.slane %v113, %v188
    %v190 = vmul.f32 %v176, %v185
    %v191 = vmul.f32 %v180, %v189
    %v192 = vadd.f32 %v172, %v190
    %v193 = vadd.f32 %v173, %v191
    %194 = vset.pattern.permute.xlu0 4
    %195 = vperm.xlu0 %194, %v110
    %v196 = vpop.permute.xlu0 %195
    %198 = vset.pattern.permute.xlu0 4
    %199 = vperm.xlu0 %198, %v111
    %v200 = vpop.permute.xlu0 %199
    %v202 = vlaneseq
    %v203 = vshrl.u32 %v202, 7
    %v204 = vsub.s32 4, %v203
    %v205 = vrot.slane %v112, %v204
    %v206 = vlaneseq
    %v207 = vshrl.u32 %v206, 7
    %v208 = vsub.s32 4, %v207
    %v209 = vrot.slane %v113, %v208
    %v210 = vmul.f32 %v196, %v205
    %v211 = vmul.f32 %v200, %v209
    %v212 = vadd.f32 %v192, %v210
    %v213 = vadd.f32 %v193, %v211
    %214 = vset.pattern.permute.xlu0 5
    %215 = vperm.xlu0 %214, %v110
    %v216 = vpop.permute.xlu0 %215
    %218 = vset.pattern.permute.xlu0 5
    %219 = vperm.xlu0 %218, %v111
    %v220 = vpop.permute.xlu0 %219
    %v222 = vlaneseq
    %v223 = vshrl.u32 %v222, 7
    %v224 = vsub.s32 5, %v223
    %v225 = vrot.slane %v112, %v224
    %v226 = vlaneseq
    %v227 = vshrl.u32 %v226, 7
    %v228 = vsub.s32 5, %v227
    %v229 = vrot.slane %v113, %v228
    %v230 = vmul.f32 %v216, %v225
    %v231 = vmul.f32 %v220, %v229
    %v232 = vadd.f32 %v212, %v230
    %v233 = vadd.f32 %v213, %v231
    %234 = vset.pattern.permute.xlu0 6
    %235 = vperm.xlu0 %234, %v110
    %v236 = vpop.permute.xlu0 %235
    %238 = vset.pattern.permute.xlu0 6
    %239 = vperm.xlu0 %238, %v111
    %v240 = vpop.permute.xlu0 %239
    %v242 = vlaneseq
    %v243 = vshrl.u32 %v242, 7
    %v244 = vsub.s32 6, %v243
    %v245 = vrot.slane %v112, %v244
    %v246 = vlaneseq
    %v247 = vshrl.u32 %v246, 7
    %v248 = vsub.s32 6, %v247
    %v249 = vrot.slane %v113, %v248
    %v250 = vmul.f32 %v236, %v245
    %v251 = vmul.f32 %v240, %v249
    %v252 = vadd.f32 %v232, %v250
    %v253 = vadd.f32 %v233, %v251
    %254 = vset.pattern.permute.xlu0 7
    %255 = vperm.xlu0 %254, %v110
    %v256 = vpop.permute.xlu0 %255
    %258 = vset.pattern.permute.xlu0 7
    %259 = vperm.xlu0 %258, %v111
    %v260 = vpop.permute.xlu0 %259
    %v262 = vlaneseq
    %v263 = vshrl.u32 %v262, 7
    %v264 = vsub.s32 7, %v263
    %v265 = vrot.slane %v112, %v264
    %v266 = vlaneseq
    %v267 = vshrl.u32 %v266, 7
    %v268 = vsub.s32 7, %v267
    %v269 = vrot.slane %v113, %v268
    %v270 = vmul.f32 %v256, %v265
    %v271 = vmul.f32 %v260, %v269
    %v272 = vadd.f32 %v252, %v270
    %v273 = vadd.f32 %v253, %v271
    %v274 = vld [vmem:[#allocation7] sm:$0xff]
    %v275 = vld [vmem:[#allocation7 + $0x8] sm:$0xff]
    %v276 = vpack.c.bf16 %v273, %v272
    %v277 = vld [vmem:[#allocation8] sm:$0xff]
    %v278 = vld [vmem:[#allocation8 + $0x8] sm:$0xf]
    %v279 = vld [vmem:[#allocation8 + $0xc] sm:$0xff]
    %v280 = vld [vmem:[#allocation8 + $0x14] sm:$0xf]
    %v281 = vld [vmem:[#allocation8 + $0x18] sm:$0xff]
    %v282 = vld [vmem:[#allocation8 + $0x20] sm:$0xf]
    %v283 = vld [vmem:[#allocation8 + $0x24] sm:$0xff]
    %v284 = vld [vmem:[#allocation8 + $0x2c] sm:$0xf]
    %v285 = vld [vmem:[#allocation8 + $0x30] sm:$0xff]
    %v286 = vld [vmem:[#allocation8 + $0x38] sm:$0xf]
    %v287 = vld [vmem:[#allocation8 + $0x3c] sm:$0xff]
    %v288 = vld [vmem:[#allocation8 + $0x44] sm:$0xf]
    %v289 = vld [vmem:[#allocation8 + $0x48] sm:$0xff]
    %v290 = vld [vmem:[#allocation8 + $0x50] sm:$0xf]
    %v291 = vld [vmem:[#allocation8 + $0x54] sm:$0xff]
    %v292 = vld [vmem:[#allocation8 + $0x5c] sm:$0xf]
    %v293 = vld [vmem:[#allocation8 + $0x60] sm:$0xff]
    %v294 = vld [vmem:[#allocation8 + $0x68] sm:$0xf]
    %v295 = vld [vmem:[#allocation8 + $0x6c] sm:$0xff]
    %v296 = vld [vmem:[#allocation8 + $0x74] sm:$0xf]
    %v297 = vld [vmem:[#allocation8 + $0x78] sm:$0xff]
    %v298 = vld [vmem:[#allocation8 + $0x80] sm:$0xf]
    %v299 = vld [vmem:[#allocation8 + $0x84] sm:$0xff]
    %v300 = vld [vmem:[#allocation8 + $0x8c] sm:$0xf]
    %v301 = vld [vmem:[#allocation8 + $0x90] sm:$0xff]
    %v302 = vld [vmem:[#allocation8 + $0x98] sm:$0xf]
    %v303 = vld [vmem:[#allocation8 + $0x9c] sm:$0xff]
    %v304 = vld [vmem:[#allocation8 + $0xa4] sm:$0xf]
    %v305 = vld [vmem:[#allocation8 + $0xa8] sm:$0xff]
    %v306 = vld [vmem:[#allocation8 + $0xb0] sm:$0xf]
    %v307 = vld [vmem:[#allocation8 + $0xb4] sm:$0xff]
    %v308 = vld [vmem:[#allocation8 + $0xbc] sm:$0xf]
    %v309 = vld [vmem:[%s6] sm:$0x7]
    %v311 = vlaneseq
    %v312 = vshrl.u32 %v311, 7
    %v313 = vsub.s32 0, %v312
    %v314 = vrot.slane %v309, %v313
    %v315 = vlaneseq
    %v316 = vshrl.u32 %v315, 7
    %v317 = vsub.s32 1, %v316
    %v318 = vrot.slane %v309, %v317
    %v319 = vlaneseq
    %v320 = vshrl.u32 %v319, 7
    %v321 = vsub.s32 2, %v320
    %v322 = vrot.slane %v309, %v321
    %v358 = vunpack.c.l.b16 %v277
    %v359 = vunpack.c.h.b16 %v277
    %v360 = vunpack.c.l.b16 %v278
    %v361 = vunpack.c.l.b16 %v279
    %v362 = vunpack.c.h.b16 %v279
    %v363 = vunpack.c.l.b16 %v280
    %v364 = vunpack.c.l.b16 %v281
    %v365 = vunpack.c.h.b16 %v281
    %v366 = vunpack.c.l.b16 %v282
    %v367 = vunpack.c.l.b16 %v283
    %v368 = vunpack.c.h.b16 %v283
    %v369 = vunpack.c.l.b16 %v284
    %v370 = vunpack.c.l.b16 %v285
    %v371 = vunpack.c.h.b16 %v285
    %v372 = vunpack.c.l.b16 %v286
    %v373 = vunpack.c.l.b16 %v287
    %v374 = vunpack.c.h.b16 %v287
    %v375 = vunpack.c.l.b16 %v288
    %v376 = vunpack.c.l.b16 %v289
    %v377 = vunpack.c.h.b16 %v289
    %v378 = vunpack.c.l.b16 %v290
    %v379 = vunpack.c.l.b16 %v291
    %v380 = vunpack.c.h.b16 %v291
    %v381 = vunpack.c.l.b16 %v292
    %v382 = vunpack.c.l.b16 %v293
    %v383 = vunpack.c.h.b16 %v293
    %v384 = vunpack.c.l.b16 %v294
    %v385 = vunpack.c.l.b16 %v295
    %v386 = vunpack.c.h.b16 %v295
    %v387 = vunpack.c.l.b16 %v296
    %v388 = vunpack.c.l.b16 %v297
    %v389 = vunpack.c.h.b16 %v297
    %v390 = vunpack.c.l.b16 %v298
    %v391 = vunpack.c.l.b16 %v299
    %v392 = vunpack.c.h.b16 %v299
    %v393 = vunpack.c.l.b16 %v300
    %v394 = vunpack.c.l.b16 %v301
    %v395 = vunpack.c.h.b16 %v301
    %v396 = vunpack.c.l.b16 %v302
    %v397 = vunpack.c.l.b16 %v303
    %v398 = vunpack.c.h.b16 %v303
    %v399 = vunpack.c.l.b16 %v304
    %v400 = vunpack.c.l.b16 %v305
    %v401 = vunpack.c.h.b16 %v305
    %v402 = vunpack.c.l.b16 %v306
    %v403 = vunpack.c.l.b16 %v307
    %v404 = vunpack.c.h.b16 %v307
    %v405 = vunpack.c.l.b16 %v308
    %v406 = vpack.c.b16 %v361, %v358
    %v407 = vpack.c.b16 %v362, %v359
    %v408 = vpack.c.b16 %v363, %v360
    %v409 = vpack.c.b16 %v367, %v364
    %v410 = vpack.c.b16 %v368, %v365
    %v411 = vpack.c.b16 %v369, %v366
    %v412 = vpack.c.b16 %v373, %v370
    %v413 = vpack.c.b16 %v374, %v371
    %v414 = vpack.c.b16 %v375, %v372
    %v415 = vpack.c.b16 %v379, %v376
    %v416 = vpack.c.b16 %v380, %v377
    %v417 = vpack.c.b16 %v381, %v378
    %v418 = vpack.c.b16 %v385, %v382
    %v419 = vpack.c.b16 %v386, %v383
    %v420 = vpack.c.b16 %v387, %v384
    %v421 = vpack.c.b16 %v391, %v388
    %v422 = vpack.c.b16 %v392, %v389
    %v423 = vpack.c.b16 %v393, %v390
    %v424 = vpack.c.b16 %v397, %v394
    %v425 = vpack.c.b16 %v398, %v395
    %v426 = vpack.c.b16 %v399, %v396
    %v427 = vpack.c.b16 %v403, %v400
    %v428 = vpack.c.b16 %v404, %v401
    %v429 = vpack.c.b16 %v405, %v402
    %454 = vmatprep.subr.bf16.mxu0 %v428
    %455 = vmatpush1.bf16.msra.mxu0 %v427
    %456 = vmatprep.subr.bf16.mxu0 %v425
    %457 = vmatpush1.bf16.msra.mxu0 %v424
    %458 = vmatprep.subr.bf16.mxu0 %v422
    %459 = vmatpush1.bf16.msra.mxu0 %v421
    %460 = vmatprep.subr.bf16.mxu0 %v419
    %461 = vmatpush1.bf16.msra.mxu0 %v418
    %462 = vmatprep.subr.bf16.mxu0 %v416
    %463 = vmatpush1.bf16.msra.mxu0 %v415
    %464 = vmatprep.subr.bf16.mxu0 %v413
    %465 = vmatpush1.bf16.msra.mxu0 %v412
    %466 = vmatprep.subr.bf16.mxu0 %v410
    %467 = vmatpush1.bf16.msra.mxu0 %v409
    %468 = vmatprep.subr.bf16.mxu0 %v407
    %469 = vmatpush1.bf16.msra.mxu0 %v406
    %470 = vmatprep.subr.bf16.mxu0 0
    %471 = vmatpush2.bf16.msra.mxu0 0
    %472 = vmatprep.subr.bf16.mxu0 0
    %473 = vmatpush2.bf16.msra.mxu0 0
    %474 = vmatprep.subr.bf16.mxu0 0
    %475 = vmatpush2.bf16.msra.mxu0 0
    %476 = vmatprep.subr.bf16.mxu0 0
    %477 = vmatpush2.bf16.msra.mxu0 0
    %478 = vmatprep.subr.bf16.mxu0 0
    %479 = vmatpush2.bf16.msra.mxu0 0
    %480 = vmatprep.subr.bf16.mxu0 0
    %481 = vmatpush2.bf16.msra.mxu0 0
    %482 = vmatprep.subr.bf16.mxu0 0
    %483 = vmatpush2.bf16.msra.mxu0 0
    %484 = vmatprep.subr.bf16.mxu0 0
    %485 = vmatpush2.bf16.msra.mxu0 0
    %486 = vmatprep.mubr.bf16.mxu0 0
    %487 = vmatmul.mubr.bf16.gmra.mxu0 %v276
    %v488 = vpop.f32.mrf.mxu0
    %v489 = vadd.f32 %v314, %v488
    %v490 = vpop.f32.mrf.mxu0
    %v491 = vadd.f32 %v318, %v490
    %v492 = vpop.f32.mrf.mxu0
    %v493 = vadd.f32 %v314, %v492
    %v494 = vpop.f32.mrf.mxu0
    %v495 = vadd.f32 %v318, %v494
    %496 = vdwg.mxu0
    %497 = vmatprep.subr.bf16.mxu0 0
    %498 = vmatpush1.bf16.msra.mxu0 %v429
    %499 = vmatprep.subr.bf16.mxu0 0
    %500 = vmatpush1.bf16.msra.mxu0 %v426
    %501 = vmatprep.subr.bf16.mxu0 0
    %502 = vmatpush1.bf16.msra.mxu0 %v423
    %503 = vmatprep.subr.bf16.mxu0 0
    %504 = vmatpush1.bf16.msra.mxu0 %v420
    %505 = vmatprep.subr.bf16.mxu0 0
    %506 = vmatpush1.bf16.msra.mxu0 %v417
    %507 = vmatprep.subr.bf16.mxu0 0
    %508 = vmatpush1.bf16.msra.mxu0 %v414
    %509 = vmatprep.subr.bf16.mxu0 0
    %510 = vmatpush1.bf16.msra.mxu0 %v411
    %511 = vmatprep.subr.bf16.mxu0 0
    %512 = vmatpush1.bf16.msra.mxu0 %v408
    %513 = vmatprep.subr.bf16.mxu0 0
    %514 = vmatpush2.bf16.msra.mxu0 0
    %515 = vmatprep.subr.bf16.mxu0 0
    %516 = vmatpush2.bf16.msra.mxu0 0
    %517 = vmatprep.subr.bf16.mxu0 0
    %518 = vmatpush2.bf16.msra.mxu0 0
    %519 = vmatprep.subr.bf16.mxu0 0
    %520 = vmatpush2.bf16.msra.mxu0 0
    %521 = vmatprep.subr.bf16.mxu0 0
    %522 = vmatpush2.bf16.msra.mxu0 0
    %523 = vmatprep.subr.bf16.mxu0 0
    %524 = vmatpush2.bf16.msra.mxu0 0
    %525 = vmatprep.subr.bf16.mxu0 0
    %526 = vmatpush2.bf16.msra.mxu0 0
    %527 = vmatprep.subr.bf16.mxu0 0
    %528 = vmatpush2.bf16.msra.mxu0 0
    %529 = vmatprep.mubr.bf16.mxu0 0
    %530 = vmatmul.mubr.bf16.gmra.mxu0 %v276
    %v531 = vpop.f32.mrf.mxu0
    %v532 = vadd.f32 %v322, %v531
    %v533 = vpop.f32.mrf.mxu0
    %v534 = vpop.f32.mrf.mxu0
    %v535 = vadd.f32 %v322, %v534
    %v536 = vpop.f32.mrf.mxu0
    %537 = vdwg.mxu0
    %v538 = vpack.c.bf16 %v275, %v274
    %v539 = vld [vmem:[#allocation10] sm:$0xff]
    %v540 = vld [vmem:[#allocation10 + $0x8] sm:$0xff]
    %v541 = vld [vmem:[#allocation10 + $0x10] sm:$0xff]
    %v542 = vld [vmem:[#allocation10 + $0x18] sm:$0xff]
    %v543 = vld [vmem:[#allocation10 + $0x20] sm:$0xff]
    %v544 = vld [vmem:[#allocation10 + $0x28] sm:$0xff]
    %v545 = vld [vmem:[#allocation10 + $0x30] sm:$0xff]
    %v546 = vld [vmem:[#allocation10 + $0x38] sm:$0xff]
    %v547 = vld [vmem:[#allocation10 + $0x40] sm:$0xff]
    %v548 = vld [vmem:[#allocation10 + $0x48] sm:$0xff]
    %v549 = vld [vmem:[#allocation10 + $0x50] sm:$0xff]
    %v550 = vld [vmem:[#allocation10 + $0x58] sm:$0xff]
    %v551 = vld [vmem:[#allocation10 + $0x60] sm:$0xff]
    %v552 = vld [vmem:[#allocation10 + $0x68] sm:$0xff]
    %v553 = vld [vmem:[#allocation10 + $0x70] sm:$0xff]
    %v554 = vld [vmem:[#allocation10 + $0x78] sm:$0xff]
    %v571 = vunpack.c.l.b16 %v539
    %v572 = vunpack.c.h.b16 %v539
    %v573 = vunpack.c.l.b16 %v540
    %v574 = vunpack.c.h.b16 %v540
    %v575 = vunpack.c.l.b16 %v541
    %v576 = vunpack.c.h.b16 %v541
    %v577 = vunpack.c.l.b16 %v542
    %v578 = vunpack.c.h.b16 %v542
    %v579 = vunpack.c.l.b16 %v543
    %v580 = vunpack.c.h.b16 %v543
    %v581 = vunpack.c.l.b16 %v544
    %v582 = vunpack.c.h.b16 %v544
    %v583 = vunpack.c.l.b16 %v545
    %v584 = vunpack.c.h.b16 %v545
    %v585 = vunpack.c.l.b16 %v546
    %v586 = vunpack.c.h.b16 %v546
    %v587 = vunpack.c.l.b16 %v547
    %v588 = vunpack.c.h.b16 %v547
    %v589 = vunpack.c.l.b16 %v548
    %v590 = vunpack.c.h.b16 %v548
    %v591 = vunpack.c.l.b16 %v549
    %v592 = vunpack.c.h.b16 %v549
    %v593 = vunpack.c.l.b16 %v550
    %v594 = vunpack.c.h.b16 %v550
    %v595 = vunpack.c.l.b16 %v551
    %v596 = vunpack.c.h.b16 %v551
    %v597 = vunpack.c.l.b16 %v552
    %v598 = vunpack.c.h.b16 %v552
    %v599 = vunpack.c.l.b16 %v553
    %v600 = vunpack.c.h.b16 %v553
    %v601 = vunpack.c.l.b16 %v554
    %v602 = vunpack.c.h.b16 %v554
    %v603 = vpack.c.b16 %v573, %v571
    %v604 = vpack.c.b16 %v574, %v572
    %v605 = vpack.c.b16 %v577, %v575
    %v606 = vpack.c.b16 %v578, %v576
    %v607 = vpack.c.b16 %v581, %v579
    %v608 = vpack.c.b16 %v582, %v580
    %v609 = vpack.c.b16 %v585, %v583
    %v610 = vpack.c.b16 %v586, %v584
    %v611 = vpack.c.b16 %v589, %v587
    %v612 = vpack.c.b16 %v590, %v588
    %v613 = vpack.c.b16 %v593, %v591
    %v614 = vpack.c.b16 %v594, %v592
    %v615 = vpack.c.b16 %v597, %v595
    %v616 = vpack.c.b16 %v598, %v596
    %v617 = vpack.c.b16 %v601, %v599
    %v618 = vpack.c.b16 %v602, %v600
    %635 = vmatprep.subr.bf16.mxu0 %v618
    %636 = vmatpush1.bf16.msra.mxu0 %v617
    %637 = vmatprep.subr.bf16.mxu0 %v616
    %638 = vmatpush1.bf16.msra.mxu0 %v615
    %639 = vmatprep.subr.bf16.mxu0 %v614
    %640 = vmatpush1.bf16.msra.mxu0 %v613
    %641 = vmatprep.subr.bf16.mxu0 %v612
    %642 = vmatpush1.bf16.msra.mxu0 %v611
    %643 = vmatprep.subr.bf16.mxu0 %v610
    %644 = vmatpush1.bf16.msra.mxu0 %v609
    %645 = vmatprep.subr.bf16.mxu0 %v608
    %646 = vmatpush1.bf16.msra.mxu0 %v607
    %647 = vmatprep.subr.bf16.mxu0 %v606
    %648 = vmatpush1.bf16.msra.mxu0 %v605
    %649 = vmatprep.subr.bf16.mxu0 %v604
    %650 = vmatpush1.bf16.msra.mxu0 %v603
    %651 = vmatprep.subr.bf16.mxu0 0
    %652 = vmatpush2.bf16.msra.mxu0 0
    %653 = vmatprep.subr.bf16.mxu0 0
    %654 = vmatpush2.bf16.msra.mxu0 0
    %655 = vmatprep.subr.bf16.mxu0 0
    %656 = vmatpush2.bf16.msra.mxu0 0
    %657 = vmatprep.subr.bf16.mxu0 0
    %658 = vmatpush2.bf16.msra.mxu0 0
    %659 = vmatprep.subr.bf16.mxu0 0
    %660 = vmatpush2.bf16.msra.mxu0 0
    %661 = vmatprep.subr.bf16.mxu0 0
    %662 = vmatpush2.bf16.msra.mxu0 0
    %663 = vmatprep.subr.bf16.mxu0 0
    %664 = vmatpush2.bf16.msra.mxu0 0
    %665 = vmatprep.subr.bf16.mxu0 0
    %666 = vmatpush2.bf16.msra.mxu0 0
    %667 = vmatprep.mubr.bf16.mxu0 0
    %668 = vmatmul.mubr.bf16.gmra.mxu0 %v538
    %v669 = vpop.f32.mrf.mxu0
    %v670 = vadd.f32 0.0, %v669
    %v671 = vpop.f32.mrf.mxu0
    %v672 = vadd.f32 0.0, %v671
    %v673 = vpop.f32.mrf.mxu0
    %v674 = vadd.f32 0.0, %v673
    %v675 = vpop.f32.mrf.mxu0
    %v676 = vadd.f32 0.0, %v675
    %677 = vdwg.mxu0
    %v678 = vadd.f32 %v489, %v670
    %v679 = vadd.f32 %v493, %v674
    %v680 = vadd.f32 %v491, %v672
    %v681 = vadd.f32 %v495, %v676
    %v682 = vmul.f32 %v678, 0.5
    %v683 = vmul.f32 %v679, 0.5
    %v684 = vtanh.pop %v682
    %v685 = vtanh.pop %v683
    %v686 = vadd.f32 %v684, 1.0
    %v687 = vadd.f32 %v685, 1.0
    %v688 = vmul.f32 %v686, 0.5
    %v689 = vmul.f32 %v687, 0.5
    %v690 = vmul.f32 %v680, 0.5
    %v691 = vmul.f32 %v681, 0.5
    %v692 = vtanh.pop %v690
    %v693 = vtanh.pop %v691
    %v694 = vadd.f32 %v692, 1.0
    %v695 = vadd.f32 %v693, 1.0
    %v696 = vmul.f32 %v694, 0.5
    %v697 = vmul.f32 %v695, 0.5
    %v698 = vmul.f32 %v688, %v274
    %v699 = vmul.f32 %v689, %v275
    %v700 = vpack.c.bf16 %v699, %v698
    %v701 = vld [vmem:[#allocation11] sm:$0xf]
    %v702 = vld [vmem:[#allocation11 + $0x4] sm:$0xf]
    %v703 = vld [vmem:[#allocation11 + $0x8] sm:$0xf]
    %v704 = vld [vmem:[#allocation11 + $0xc] sm:$0xf]
    %v705 = vld [vmem:[#allocation11 + $0x10] sm:$0xf]
    %v706 = vld [vmem:[#allocation11 + $0x14] sm:$0xf]
    %v707 = vld [vmem:[#allocation11 + $0x18] sm:$0xf]
    %v708 = vld [vmem:[#allocation11 + $0x1c] sm:$0xf]
    %v709 = vld [vmem:[#allocation11 + $0x20] sm:$0xf]
    %v710 = vld [vmem:[#allocation11 + $0x24] sm:$0xf]
    %v711 = vld [vmem:[#allocation11 + $0x28] sm:$0xf]
    %v712 = vld [vmem:[#allocation11 + $0x2c] sm:$0xf]
    %v713 = vld [vmem:[#allocation11 + $0x30] sm:$0xf]
    %v714 = vld [vmem:[#allocation11 + $0x34] sm:$0xf]
    %v715 = vld [vmem:[#allocation11 + $0x38] sm:$0xf]
    %v716 = vld [vmem:[#allocation11 + $0x3c] sm:$0xf]
    %v733 = vunpack.c.l.b16 %v701
    %v734 = vunpack.c.l.b16 %v702
    %v735 = vunpack.c.l.b16 %v703
    %v736 = vunpack.c.l.b16 %v704
    %v737 = vunpack.c.l.b16 %v705
    %v738 = vunpack.c.l.b16 %v706
    %v739 = vunpack.c.l.b16 %v707
    %v740 = vunpack.c.l.b16 %v708
    %v741 = vunpack.c.l.b16 %v709
    %v742 = vunpack.c.l.b16 %v710
    %v743 = vunpack.c.l.b16 %v711
    %v744 = vunpack.c.l.b16 %v712
    %v745 = vunpack.c.l.b16 %v713
    %v746 = vunpack.c.l.b16 %v714
    %v747 = vunpack.c.l.b16 %v715
    %v748 = vunpack.c.l.b16 %v716
    %v749 = vpack.c.b16 %v734, %v733
    %v750 = vpack.c.b16 %v736, %v735
    %v751 = vpack.c.b16 %v738, %v737
    %v752 = vpack.c.b16 %v740, %v739
    %v753 = vpack.c.b16 %v742, %v741
    %v754 = vpack.c.b16 %v744, %v743
    %v755 = vpack.c.b16 %v746, %v745
    %v756 = vpack.c.b16 %v748, %v747
    %765 = vmatprep.subr.bf16.mxu0 0
    %766 = vmatpush1.bf16.msra.mxu0 %v756
    %767 = vmatprep.subr.bf16.mxu0 0
    %768 = vmatpush1.bf16.msra.mxu0 %v755
    %769 = vmatprep.subr.bf16.mxu0 0
    %770 = vmatpush1.bf16.msra.mxu0 %v754
    %771 = vmatprep.subr.bf16.mxu0 0
    %772 = vmatpush1.bf16.msra.mxu0 %v753
    %773 = vmatprep.subr.bf16.mxu0 0
    %774 = vmatpush1.bf16.msra.mxu0 %v752
    %775 = vmatprep.subr.bf16.mxu0 0
    %776 = vmatpush1.bf16.msra.mxu0 %v751
    %777 = vmatprep.subr.bf16.mxu0 0
    %778 = vmatpush1.bf16.msra.mxu0 %v750
    %779 = vmatprep.subr.bf16.mxu0 0
    %780 = vmatpush1.bf16.msra.mxu0 %v749
    %781 = vmatprep.subr.bf16.mxu0 0
    %782 = vmatpush2.bf16.msra.mxu0 0
    %783 = vmatprep.subr.bf16.mxu0 0
    %784 = vmatpush2.bf16.msra.mxu0 0
    %785 = vmatprep.subr.bf16.mxu0 0
    %786 = vmatpush2.bf16.msra.mxu0 0
    %787 = vmatprep.subr.bf16.mxu0 0
    %788 = vmatpush2.bf16.msra.mxu0 0
    %789 = vmatprep.subr.bf16.mxu0 0
    %790 = vmatpush2.bf16.msra.mxu0 0
    %791 = vmatprep.subr.bf16.mxu0 0
    %792 = vmatpush2.bf16.msra.mxu0 0
    %793 = vmatprep.subr.bf16.mxu0 0
    %794 = vmatpush2.bf16.msra.mxu0 0
    %795 = vmatprep.subr.bf16.mxu0 0
    %796 = vmatpush2.bf16.msra.mxu0 0
    %797 = vmatprep.mubr.bf16.mxu0 0
    %798 = vmatmul.mubr.bf16.gmra.mxu0 %v700
    %v799 = vpop.f32.mrf.mxu0
    %v800 = vadd.f32 0.0, %v799
    %v801 = vpop.f32.mrf.mxu0
    %v802 = vpop.f32.mrf.mxu0
    %v803 = vadd.f32 0.0, %v802
    %v804 = vpop.f32.mrf.mxu0
    %805 = vdwg.mxu0
    %v806 = vadd.f32 %v532, %v800
    %v807 = vadd.f32 %v535, %v803
    %v808 = vtanh.pop %v806
    %v809 = vtanh.pop %v807
    %v810 = vsub.f32 %v808, %v274
    %v811 = vsub.f32 %v809, %v275
    %v812 = vmul.f32 %v696, %v810
    %v813 = vmul.f32 %v697, %v811
    %v814 = vadd.f32 %v274, %v812
    %v815 = vadd.f32 %v275, %v813
    %816 = vst [vmem:[#allocation13] sm:$0xff] %v814
    %817 = vst [vmem:[#allocation13 + $0x8] sm:$0xff] %v815
    // Predicated region
    $region54: #{tpu_custom_call.1} parent=1 // pred_check
      _
    $region55: #{tpu_custom_call.1} parent=1 // pred_check_branch
      %819 = sbr.rel (0) target = $region57
    $region56: #{tpu_custom_call.1} parent=1 // pred_region
      %s821 = ssub.s32 256, 256
      %822 = vsyncadd [#allocation4], %s821
      %s823 = sshll.u32 [#allocation13], 4
      %s824 = int_to_ptr.vmem [resolvable:$true] %s823
      %829 = dma.vmem_to_hbm [thread:$0]  %s824, 256, %s7, [#allocation4], 128, 128, 8
    $region57: #{tpu_custom_call.1} parent=1 // pred_fallthru
      _
    // Predicated region
    $region58: #{tpu_custom_call.1} parent=1 // pred_check
      _
    $region59: #{tpu_custom_call.1} parent=1 // pred_check_branch
      %831 = sbr.rel (0) target = $region61
    $region60: #{tpu_custom_call.1} parent=1 // pred_region
      %832 = dma.done [#allocation4], 256
    $region61: #{tpu_custom_call.1} parent=1 // pred_fallthru
      _
    %833 = vsyncpa [#allocation3], 1
    %834 = vsyncpa [#allocation6], 1
    %835 = vsyncpa [#allocation9], 1
    %836 = vsyncpa [#allocation12], 1
    %837 = vsyncpa [#allocation4], 1

// kernel: tpu_custom_call.1
$region0: #{tpu_custom_call.1}
  #allocation0 [shape = 'u32[]', space=smem, size = 0x4, offset = 0x4, fixed_abs, tag = 'smem constant byte address 0x4 - core index']
  #allocation1 [shape = 'u32[144,128]{1,0:T(1,128)}', space=vmem, size = 0x12000, scoped, tag = 'internal scratch']
  %s0 = inlined_call_operand.hbm [shape: f32[2,8,8], index: 0, kind: input, shape index: {}]
  %s1 = inlined_call_operand.hbm [shape: f32[2,8,128], index: 1, kind: input, shape index: {}]
  %s2 = inlined_call_operand.hbm [shape: f32[2,8,128], index: 2, kind: input, shape index: {}]
  %s3 = inlined_call_operand.hbm [shape: bf16[128,384], index: 3, kind: input, shape index: {}]
  %s4 = inlined_call_operand.hbm [shape: bf16[128,256], index: 4, kind: input, shape index: {}]
  %s5 = inlined_call_operand.hbm [shape: bf16[128,128], index: 5, kind: input, shape index: {}]
  %s6 = inlined_call_operand.vmem [shape: f32[1,384], index: 6, kind: input, shape index: {}]
  %s7 = inlined_call_operand.hbm [shape: f32[2,8,128], index: 7, kind: output, shape index: {}]
  %s8 = sld [smem:[#allocation0]]
  $region62: #{tpu_custom_call.1} parent=0
    _
  %s10 = ssub.s32 1, %s8
  %s11 = scalar_select 0, %s10, %s8
  $region1: #{tpu_custom_call.1} parent=0
    #allocation2 [shape = 'u8[8192]{0}', space=vmem, size = 0x2000, scoped, tag = 'input window, operand 0, single buffered']
    #allocation3 [shape = 's32[1]{0}', space=sflag, size = 0x4, scoped, tag = 'scoped memory for tpu_custom_call.1']
    #allocation4 [shape = 's32[1]{0}', space=sflag, size = 0x4, scoped, tag = 'scoped memory for tpu_custom_call.1']
    #allocation5 [shape = 'u8[8192]{0}', space=vmem, size = 0x2000, scoped, tag = 'input window, operand 1, single buffered']
    #allocation6 [shape = 's32[1]{0}', space=sflag, size = 0x4, scoped, tag = 'scoped memory for tpu_custom_call.1']
    #allocation7 [shape = 'u8[8192]{0}', space=vmem, size = 0x2000, scoped, tag = 'input window, operand 2, single buffered']
    #allocation8 [shape = 'u8[98304]{0}', space=vmem, size = 0x18000, scoped, tag = 'input window, operand 3, single buffered']
    #allocation9 [shape = 's32[1]{0}', space=sflag, size = 0x4, scoped, tag = 'scoped memory for tpu_custom_call.1']
    #allocation10 [shape = 'u8[65536]{0}', space=vmem, size = 0x10000, scoped, tag = 'input window, operand 4, single buffered']
    #allocation11 [shape = 'u8[32768]{0}', space=vmem, size = 0x8000, scoped, tag = 'input window, operand 5, single buffered']
    #allocation12 [shape = 's32[1]{0}', space=sflag, size = 0x4, scoped, tag = 'scoped memory for tpu_custom_call.1']
    #allocation13 [shape = 'u8[8192]{0}', space=vmem, size = 0x2000, scoped, tag = 'output window, operand 0, single buffered']
    %12 = vsyncpa [#allocation3], 0
    %13 = vsyncpa [#allocation6], 0
    %14 = vsyncpa [#allocation9], 0
    %15 = vsyncpa [#allocation12], 0
    %16 = vsyncpa [#allocation4], 0
    // Predicated region
    $region2: #{tpu_custom_call.1} parent=1 // pred_check
      _
    $region3: #{tpu_custom_call.1} parent=1 // pred_check_branch
      %18 = sbr.rel (0) target = $region5
    $region4: #{tpu_custom_call.1} parent=1 // pred_region
      %s20 = ssub.s32 256, 256
      %21 = vsyncadd [#allocation3], %s20
      %s22 = sshll.u32 [#allocation2], 4
      %s23 = int_to_ptr.vmem [resolvable:$true] %s22
      %28 = dma.hbm_to_vmem [thread:$0]  %s0, 256, %s23, [#allocation3], 128, 128, 8
    $region5: #{tpu_custom_call.1} parent=1 // pred_fallthru
      _
    // Predicated region
    $region6: #{tpu_custom_call.1} parent=1 // pred_check
      _
    $region7: #{tpu_custom_call.1} parent=1 // pred_check_branch
      %30 = sbr.rel (0) target = $region9
    $region8: #{tpu_custom_call.1} parent=1 // pred_region
      %s32 = ssub.s32 256, 256
      %33 = vsyncadd [#allocation6], %s32
      %s34 = sshll.u32 [#allocation5], 4
      %s35 = int_to_ptr.vmem [resolvable:$true] %s34
      %40 = dma.hbm_to_vmem [thread:$0]  %s1, 256, %s35, [#allocation6], 128, 128, 8
    $region9: #{tpu_custom_call.1} parent=1 // pred_fallthru
      _
    // Predicated region
    $region10: #{tpu_custom_call.1} parent=1 // pred_check
      _
    $region11: #{tpu_custom_call.1} parent=1 // pred_check_branch
      %42 = sbr.rel (0) target = $region13
    $region12: #{tpu_custom_call.1} parent=1 // pred_region
      %s44 = ssub.s32 256, 256
      %45 = vsyncadd [#allocation6], %s44
      %s46 = sshll.u32 [#allocation7], 4
      %s47 = int_to_ptr.vmem [resolvable:$true] %s46
      %52 = dma.hbm_to_vmem [thread:$0]  %s2, 256, %s47, [#allocation6], 128, 128, 8
    $region13: #{tpu_custom_call.1} parent=1 // pred_fallthru
      _
    // Predicated region
    $region14: #{tpu_custom_call.1} parent=1 // pred_check
      _
    $region15: #{tpu_custom_call.1} parent=1 // pred_check_branch
      %54 = sbr.rel (0) target = $region17
    $region16: #{tpu_custom_call.1} parent=1 // pred_region
      %s56 = ssub.s32 3072, 3072
      %57 = vsyncadd [#allocation9], %s56
      %s58 = sshll.u32 [#allocation8], 4
      %s59 = int_to_ptr.vmem [resolvable:$true] %s58
      %64 = dma.hbm_to_vmem [thread:$0]  %s3, 3072, %s59, [#allocation9], 192, 192, 12
    $region17: #{tpu_custom_call.1} parent=1 // pred_fallthru
      _
    // Predicated region
    $region18: #{tpu_custom_call.1} parent=1 // pred_check
      _
    $region19: #{tpu_custom_call.1} parent=1 // pred_check_branch
      %66 = sbr.rel (0) target = $region21
    $region20: #{tpu_custom_call.1} parent=1 // pred_region
      %s68 = ssub.s32 2048, 2048
      %69 = vsyncadd [#allocation9], %s68
      %s70 = sshll.u32 [#allocation10], 4
      %s71 = int_to_ptr.vmem [resolvable:$true] %s70
      %76 = dma.hbm_to_vmem [thread:$0]  %s4, 2048, %s71, [#allocation9], 128, 128, 8
    $region21: #{tpu_custom_call.1} parent=1 // pred_fallthru
      _
    // Predicated region
    $region22: #{tpu_custom_call.1} parent=1 // pred_check
      _
    $region23: #{tpu_custom_call.1} parent=1 // pred_check_branch
      %78 = sbr.rel (0) target = $region25
    $region24: #{tpu_custom_call.1} parent=1 // pred_region
      %s80 = ssub.s32 1024, 1024
      %81 = vsyncadd [#allocation12], %s80
      %s82 = sshll.u32 [#allocation11], 4
      %s83 = int_to_ptr.vmem [resolvable:$true] %s82
      %88 = dma.hbm_to_vmem [thread:$0]  %s5, 1024, %s83, [#allocation12], 64, 64, 4
    $region25: #{tpu_custom_call.1} parent=1 // pred_fallthru
      _
    // Predicated region
    $region26: #{tpu_custom_call.1} parent=1 // pred_check
      _
    $region27: #{tpu_custom_call.1} parent=1 // pred_check_branch
      %90 = sbr.rel (0) target = $region29
    $region28: #{tpu_custom_call.1} parent=1 // pred_region
      _
    $region29: #{tpu_custom_call.1} parent=1 // pred_fallthru
      _
    // Predicated region
    $region30: #{tpu_custom_call.1} parent=1 // pred_check
      _
    $region31: #{tpu_custom_call.1} parent=1 // pred_check_branch
      %92 = sbr.rel (0) target = $region33
    $region32: #{tpu_custom_call.1} parent=1 // pred_region
      %93 = dma.done [#allocation3], 256
    $region33: #{tpu_custom_call.1} parent=1 // pred_fallthru
      _
    // Predicated region
    $region34: #{tpu_custom_call.1} parent=1 // pred_check
      _
    $region35: #{tpu_custom_call.1} parent=1 // pred_check_branch
      %95 = sbr.rel (0) target = $region37
    $region36: #{tpu_custom_call.1} parent=1 // pred_region
      %96 = dma.done [#allocation6], 256
    $region37: #{tpu_custom_call.1} parent=1 // pred_fallthru
      _
    // Predicated region
    $region38: #{tpu_custom_call.1} parent=1 // pred_check
      _
    $region39: #{tpu_custom_call.1} parent=1 // pred_check_branch
      %98 = sbr.rel (0) target = $region41
    $region40: #{tpu_custom_call.1} parent=1 // pred_region
      %99 = dma.done [#allocation6], 256
    $region41: #{tpu_custom_call.1} parent=1 // pred_fallthru
      _
    // Predicated region
    $region42: #{tpu_custom_call.1} parent=1 // pred_check
      _
    $region43: #{tpu_custom_call.1} parent=1 // pred_check_branch
      %101 = sbr.rel (0) target = $region45
    $region44: #{tpu_custom_call.1} parent=1 // pred_region
      %102 = dma.done [#allocation9], 3072
    $region45: #{tpu_custom_call.1} parent=1 // pred_fallthru
      _
    // Predicated region
    $region46: #{tpu_custom_call.1} parent=1 // pred_check
      _
    $region47: #{tpu_custom_call.1} parent=1 // pred_check_branch
      %104 = sbr.rel (0) target = $region49
    $region48: #{tpu_custom_call.1} parent=1 // pred_region
      %105 = dma.done [#allocation9], 2048
    $region49: #{tpu_custom_call.1} parent=1 // pred_fallthru
      _
    // Predicated region
    $region50: #{tpu_custom_call.1} parent=1 // pred_check
      _
    $region51: #{tpu_custom_call.1} parent=1 // pred_check_branch
      %107 = sbr.rel (0) target = $region53
    $region52: #{tpu_custom_call.1} parent=1 // pred_region
      %108 = dma.done [#allocation12], 1024
    $region53: #{tpu_custom_call.1} parent=1 // pred_fallthru
      _
    %v110 = vld [vmem:[#allocation2] sm:$0xff]
    %v111 = vld [vmem:[#allocation2 + $0x8] sm:$0xff]
    %v112 = vld [vmem:[#allocation5] sm:$0xff]
    %v113 = vld [vmem:[#allocation5 + $0x8] sm:$0xff]
    %115 = vset.pattern.permute.xlu0 0
    %116 = vperm.xlu0 %115, %v110
    %v117 = vpop.permute.xlu0 %116
    %120 = vset.pattern.permute.xlu0 0
    %121 = vperm.xlu0 %120, %v111
    %v122 = vpop.permute.xlu0 %121
    %v124 = vlaneseq
    %v125 = vshrl.u32 %v124, 7
    %v126 = vsub.s32 0, %v125
    %v127 = vrot.slane %v112, %v126
    %v128 = vlaneseq
    %v129 = vshrl.u32 %v128, 7
    %v130 = vsub.s32 0, %v129
    %v131 = vrot.slane %v113, %v130
    %v132 = vmul.f32 %v117, %v127
    %v133 = vmul.f32 %v122, %v131
    %134 = vset.pattern.permute.xlu0 1
    %135 = vperm.xlu0 %134, %v110
    %v136 = vpop.permute.xlu0 %135
    %138 = vset.pattern.permute.xlu0 1
    %139 = vperm.xlu0 %138, %v111
    %v140 = vpop.permute.xlu0 %139
    %v142 = vlaneseq
    %v143 = vshrl.u32 %v142, 7
    %v144 = vsub.s32 1, %v143
    %v145 = vrot.slane %v112, %v144
    %v146 = vlaneseq
    %v147 = vshrl.u32 %v146, 7
    %v148 = vsub.s32 1, %v147
    %v149 = vrot.slane %v113, %v148
    %v150 = vmul.f32 %v136, %v145
    %v151 = vmul.f32 %v140, %v149
    %v152 = vadd.f32 %v132, %v150
    %v153 = vadd.f32 %v133, %v151
    %154 = vset.pattern.permute.xlu0 2
    %155 = vperm.xlu0 %154, %v110
    %v156 = vpop.permute.xlu0 %155
    %158 = vset.pattern.permute.xlu0 2
    %159 = vperm.xlu0 %158, %v111
    %v160 = vpop.permute.xlu0 %159
    %v162 = vlaneseq
    %v163 = vshrl.u32 %v162, 7
    %v164 = vsub.s32 2, %v163
    %v165 = vrot.slane %v112, %v164
    %v166 = vlaneseq
    %v167 = vshrl.u32 %v166, 7
    %v168 = vsub.s32 2, %v167
    %v169 = vrot.slane %v113, %v168
    %v170 = vmul.f32 %v156, %v165
    %v171 = vmul.f32 %v160, %v169
    %v172 = vadd.f32 %v152, %v170
    %v173 = vadd.f32 %v153, %v171
    %174 = vset.pattern.permute.xlu0 3
    %175 = vperm.xlu0 %174, %v110
    %v176 = vpop.permute.xlu0 %175
    %178 = vset.pattern.permute.xlu0 3
    %179 = vperm.xlu0 %178, %v111
    %v180 = vpop.permute.xlu0 %179
    %v182 = vlaneseq
    %v183 = vshrl.u32 %v182, 7
    %v184 = vsub.s32 3, %v183
    %v185 = vrot.slane %v112, %v184
    %v186 = vlaneseq
    %v187 = vshrl.u32 %v186, 7
    %v188 = vsub.s32 3, %v187
    %v189 = vrot.slane %v113, %v188
    %v190 = vmul.f32 %v176, %v185
    %v191 = vmul.f32 %v180, %v189
    %v192 = vadd.f32 %v172, %v190
    %v193 = vadd.f32 %v173, %v191
    %194 = vset.pattern.permute.xlu0 4
    %195 = vperm.xlu0 %194, %v110
    %v196 = vpop.permute.xlu0 %195
    %198 = vset.pattern.permute.xlu0 4
    %199 = vperm.xlu0 %198, %v111
    %v200 = vpop.permute.xlu0 %199
    %v202 = vlaneseq
    %v203 = vshrl.u32 %v202, 7
    %v204 = vsub.s32 4, %v203
    %v205 = vrot.slane %v112, %v204
    %v206 = vlaneseq
    %v207 = vshrl.u32 %v206, 7
    %v208 = vsub.s32 4, %v207
    %v209 = vrot.slane %v113, %v208
    %v210 = vmul.f32 %v196, %v205
    %v211 = vmul.f32 %v200, %v209
    %v212 = vadd.f32 %v192, %v210
    %v213 = vadd.f32 %v193, %v211
    %214 = vset.pattern.permute.xlu0 5
    %215 = vperm.xlu0 %214, %v110
    %v216 = vpop.permute.xlu0 %215
    %218 = vset.pattern.permute.xlu0 5
    %219 = vperm.xlu0 %218, %v111
    %v220 = vpop.permute.xlu0 %219
    %v222 = vlaneseq
    %v223 = vshrl.u32 %v222, 7
    %v224 = vsub.s32 5, %v223
    %v225 = vrot.slane %v112, %v224
    %v226 = vlaneseq
    %v227 = vshrl.u32 %v226, 7
    %v228 = vsub.s32 5, %v227
    %v229 = vrot.slane %v113, %v228
    %v230 = vmul.f32 %v216, %v225
    %v231 = vmul.f32 %v220, %v229
    %v232 = vadd.f32 %v212, %v230
    %v233 = vadd.f32 %v213, %v231
    %234 = vset.pattern.permute.xlu0 6
    %235 = vperm.xlu0 %234, %v110
    %v236 = vpop.permute.xlu0 %235
    %238 = vset.pattern.permute.xlu0 6
    %239 = vperm.xlu0 %238, %v111
    %v240 = vpop.permute.xlu0 %239
    %v242 = vlaneseq
    %v243 = vshrl.u32 %v242, 7
    %v244 = vsub.s32 6, %v243
    %v245 = vrot.slane %v112, %v244
    %v246 = vlaneseq
    %v247 = vshrl.u32 %v246, 7
    %v248 = vsub.s32 6, %v247
    %v249 = vrot.slane %v113, %v248
    %v250 = vmul.f32 %v236, %v245
    %v251 = vmul.f32 %v240, %v249
    %v252 = vadd.f32 %v232, %v250
    %v253 = vadd.f32 %v233, %v251
    %254 = vset.pattern.permute.xlu0 7
    %255 = vperm.xlu0 %254, %v110
    %v256 = vpop.permute.xlu0 %255
    %258 = vset.pattern.permute.xlu0 7
    %259 = vperm.xlu0 %258, %v111
    %v260 = vpop.permute.xlu0 %259
    %v262 = vlaneseq
    %v263 = vshrl.u32 %v262, 7
    %v264 = vsub.s32 7, %v263
    %v265 = vrot.slane %v112, %v264
    %v266 = vlaneseq
    %v267 = vshrl.u32 %v266, 7
    %v268 = vsub.s32 7, %v267
    %v269 = vrot.slane %v113, %v268
    %v270 = vmul.f32 %v256, %v265
    %v271 = vmul.f32 %v260, %v269
    %v272 = vadd.f32 %v252, %v270
    %v273 = vadd.f32 %v253, %v271
    %v274 = vld [vmem:[#allocation7] sm:$0xff]
    %v275 = vld [vmem:[#allocation7 + $0x8] sm:$0xff]
    %v276 = vpack.c.bf16 %v273, %v272
    %v277 = vld [vmem:[#allocation8] sm:$0xff]
    %v278 = vld [vmem:[#allocation8 + $0x8] sm:$0xf]
    %v279 = vld [vmem:[#allocation8 + $0xc] sm:$0xff]
    %v280 = vld [vmem:[#allocation8 + $0x14] sm:$0xf]
    %v281 = vld [vmem:[#allocation8 + $0x18] sm:$0xff]
    %v282 = vld [vmem:[#allocation8 + $0x20] sm:$0xf]
    %v283 = vld [vmem:[#allocation8 + $0x24] sm:$0xff]
    %v284 = vld [vmem:[#allocation8 + $0x2c] sm:$0xf]
    %v285 = vld [vmem:[#allocation8 + $0x30] sm:$0xff]
    %v286 = vld [vmem:[#allocation8 + $0x38] sm:$0xf]
    %v287 = vld [vmem:[#allocation8 + $0x3c] sm:$0xff]
    %v288 = vld [vmem:[#allocation8 + $0x44] sm:$0xf]
    %v289 = vld [vmem:[#allocation8 + $0x48] sm:$0xff]
    %v290 = vld [vmem:[#allocation8 + $0x50] sm:$0xf]
    %v291 = vld [vmem:[#allocation8 + $0x54] sm:$0xff]
    %v292 = vld [vmem:[#allocation8 + $0x5c] sm:$0xf]
    %v293 = vld [vmem:[#allocation8 + $0x60] sm:$0xff]
    %v294 = vld [vmem:[#allocation8 + $0x68] sm:$0xf]
    %v295 = vld [vmem:[#allocation8 + $0x6c] sm:$0xff]
    %v296 = vld [vmem:[#allocation8 + $0x74] sm:$0xf]
    %v297 = vld [vmem:[#allocation8 + $0x78] sm:$0xff]
    %v298 = vld [vmem:[#allocation8 + $0x80] sm:$0xf]
    %v299 = vld [vmem:[#allocation8 + $0x84] sm:$0xff]
    %v300 = vld [vmem:[#allocation8 + $0x8c] sm:$0xf]
    %v301 = vld [vmem:[#allocation8 + $0x90] sm:$0xff]
    %v302 = vld [vmem:[#allocation8 + $0x98] sm:$0xf]
    %v303 = vld [vmem:[#allocation8 + $0x9c] sm:$0xff]
    %v304 = vld [vmem:[#allocation8 + $0xa4] sm:$0xf]
    %v305 = vld [vmem:[#allocation8 + $0xa8] sm:$0xff]
    %v306 = vld [vmem:[#allocation8 + $0xb0] sm:$0xf]
    %v307 = vld [vmem:[#allocation8 + $0xb4] sm:$0xff]
    %v308 = vld [vmem:[#allocation8 + $0xbc] sm:$0xf]
    %v309 = vld [vmem:[%s6] sm:$0x7]
    %v311 = vlaneseq
    %v312 = vshrl.u32 %v311, 7
    %v313 = vsub.s32 0, %v312
    %v314 = vrot.slane %v309, %v313
    %v315 = vlaneseq
    %v316 = vshrl.u32 %v315, 7
    %v317 = vsub.s32 1, %v316
    %v318 = vrot.slane %v309, %v317
    %v319 = vlaneseq
    %v320 = vshrl.u32 %v319, 7
    %v321 = vsub.s32 2, %v320
    %v322 = vrot.slane %v309, %v321
    %v358 = vunpack.c.l.b16 %v277
    %v359 = vunpack.c.h.b16 %v277
    %v360 = vunpack.c.l.b16 %v278
    %v361 = vunpack.c.l.b16 %v279
    %v362 = vunpack.c.h.b16 %v279
    %v363 = vunpack.c.l.b16 %v280
    %v364 = vunpack.c.l.b16 %v281
    %v365 = vunpack.c.h.b16 %v281
    %v366 = vunpack.c.l.b16 %v282
    %v367 = vunpack.c.l.b16 %v283
    %v368 = vunpack.c.h.b16 %v283
    %v369 = vunpack.c.l.b16 %v284
    %v370 = vunpack.c.l.b16 %v285
    %v371 = vunpack.c.h.b16 %v285
    %v372 = vunpack.c.l.b16 %v286
    %v373 = vunpack.c.l.b16 %v287
    %v374 = vunpack.c.h.b16 %v287
    %v375 = vunpack.c.l.b16 %v288
    %v376 = vunpack.c.l.b16 %v289
    %v377 = vunpack.c.h.b16 %v289
    %v378 = vunpack.c.l.b16 %v290
    %v379 = vunpack.c.l.b16 %v291
    %v380 = vunpack.c.h.b16 %v291
    %v381 = vunpack.c.l.b16 %v292
    %v382 = vunpack.c.l.b16 %v293
    %v383 = vunpack.c.h.b16 %v293
    %v384 = vunpack.c.l.b16 %v294
    %v385 = vunpack.c.l.b16 %v295
    %v386 = vunpack.c.h.b16 %v295
    %v387 = vunpack.c.l.b16 %v296
    %v388 = vunpack.c.l.b16 %v297
    %v389 = vunpack.c.h.b16 %v297
    %v390 = vunpack.c.l.b16 %v298
    %v391 = vunpack.c.l.b16 %v299
    %v392 = vunpack.c.h.b16 %v299
    %v393 = vunpack.c.l.b16 %v300
    %v394 = vunpack.c.l.b16 %v301
    %v395 = vunpack.c.h.b16 %v301
    %v396 = vunpack.c.l.b16 %v302
    %v397 = vunpack.c.l.b16 %v303
    %v398 = vunpack.c.h.b16 %v303
    %v399 = vunpack.c.l.b16 %v304
    %v400 = vunpack.c.l.b16 %v305
    %v401 = vunpack.c.h.b16 %v305
    %v402 = vunpack.c.l.b16 %v306
    %v403 = vunpack.c.l.b16 %v307
    %v404 = vunpack.c.h.b16 %v307
    %v405 = vunpack.c.l.b16 %v308
    %v406 = vpack.c.b16 %v361, %v358
    %v407 = vpack.c.b16 %v362, %v359
    %v408 = vpack.c.b16 %v363, %v360
    %v409 = vpack.c.b16 %v367, %v364
    %v410 = vpack.c.b16 %v368, %v365
    %v411 = vpack.c.b16 %v369, %v366
    %v412 = vpack.c.b16 %v373, %v370
    %v413 = vpack.c.b16 %v374, %v371
    %v414 = vpack.c.b16 %v375, %v372
    %v415 = vpack.c.b16 %v379, %v376
    %v416 = vpack.c.b16 %v380, %v377
    %v417 = vpack.c.b16 %v381, %v378
    %v418 = vpack.c.b16 %v385, %v382
    %v419 = vpack.c.b16 %v386, %v383
    %v420 = vpack.c.b16 %v387, %v384
    %v421 = vpack.c.b16 %v391, %v388
    %v422 = vpack.c.b16 %v392, %v389
    %v423 = vpack.c.b16 %v393, %v390
    %v424 = vpack.c.b16 %v397, %v394
    %v425 = vpack.c.b16 %v398, %v395
    %v426 = vpack.c.b16 %v399, %v396
    %v427 = vpack.c.b16 %v403, %v400
    %v428 = vpack.c.b16 %v404, %v401
    %v429 = vpack.c.b16 %v405, %v402
    %454 = vmatprep.subr.bf16.mxu0 %v428
    %455 = vmatpush1.bf16.msra.mxu0 %v427
    %456 = vmatprep.subr.bf16.mxu0 %v425
    %457 = vmatpush1.bf16.msra.mxu0 %v424
    %458 = vmatprep.subr.bf16.mxu0 %v422
    %459 = vmatpush1.bf16.msra.mxu0 %v421
    %460 = vmatprep.subr.bf16.mxu0 %v419
    %461 = vmatpush1.bf16.msra.mxu0 %v418
    %462 = vmatprep.subr.bf16.mxu0 %v416
    %463 = vmatpush1.bf16.msra.mxu0 %v415
    %464 = vmatprep.subr.bf16.mxu0 %v413
    %465 = vmatpush1.bf16.msra.mxu0 %v412
    %466 = vmatprep.subr.bf16.mxu0 %v410
    %467 = vmatpush1.bf16.msra.mxu0 %v409
    %468 = vmatprep.subr.bf16.mxu0 %v407
    %469 = vmatpush1.bf16.msra.mxu0 %v406
    %470 = vmatprep.subr.bf16.mxu0 0
    %471 = vmatpush2.bf16.msra.mxu0 0
    %472 = vmatprep.subr.bf16.mxu0 0
    %473 = vmatpush2.bf16.msra.mxu0 0
    %474 = vmatprep.subr.bf16.mxu0 0
    %475 = vmatpush2.bf16.msra.mxu0 0
    %476 = vmatprep.subr.bf16.mxu0 0
    %477 = vmatpush2.bf16.msra.mxu0 0
    %478 = vmatprep.subr.bf16.mxu0 0
    %479 = vmatpush2.bf16.msra.mxu0 0
    %480 = vmatprep.subr.bf16.mxu0 0
    %481 = vmatpush2.bf16.msra.mxu0 0
    %482 = vmatprep.subr.bf16.mxu0 0
    %483 = vmatpush2.bf16.msra.mxu0 0
    %484 = vmatprep.subr.bf16.mxu0 0
    %485 = vmatpush2.bf16.msra.mxu0 0
    %486 = vmatprep.mubr.bf16.mxu0 0
    %487 = vmatmul.mubr.bf16.gmra.mxu0 %v276
    %v488 = vpop.f32.mrf.mxu0
    %v489 = vadd.f32 %v314, %v488
    %v490 = vpop.f32.mrf.mxu0
    %v491 = vadd.f32 %v318, %v490
    %v492 = vpop.f32.mrf.mxu0
    %v493 = vadd.f32 %v314, %v492
    %v494 = vpop.f32.mrf.mxu0
    %v495 = vadd.f32 %v318, %v494
    %496 = vdwg.mxu0
    %497 = vmatprep.subr.bf16.mxu0 0
    %498 = vmatpush1.bf16.msra.mxu0 %v429
    %499 = vmatprep.subr.bf16.mxu0 0
    %500 = vmatpush1.bf16.msra.mxu0 %v426
    %501 = vmatprep.subr.bf16.mxu0 0
    %502 = vmatpush1.bf16.msra.mxu0 %v423
    %503 = vmatprep.subr.bf16.mxu0 0
    %504 = vmatpush1.bf16.msra.mxu0 %v420
    %505 = vmatprep.subr.bf16.mxu0 0
    %506 = vmatpush1.bf16.msra.mxu0 %v417
    %507 = vmatprep.subr.bf16.mxu0 0
    %508 = vmatpush1.bf16.msra.mxu0 %v414
    %509 = vmatprep.subr.bf16.mxu0 0
    %510 = vmatpush1.bf16.msra.mxu0 %v411
    %511 = vmatprep.subr.bf16.mxu0 0
    %512 = vmatpush1.bf16.msra.mxu0 %v408
    %513 = vmatprep.subr.bf16.mxu0 0
    %514 = vmatpush2.bf16.msra.mxu0 0
    %515 = vmatprep.subr.bf16.mxu0 0
    %516 = vmatpush2.bf16.msra.mxu0 0
    %517 = vmatprep.subr.bf16.mxu0 0
    %518 = vmatpush2.bf16.msra.mxu0 0
    %519 = vmatprep.subr.bf16.mxu0 0
    %520 = vmatpush2.bf16.msra.mxu0 0
    %521 = vmatprep.subr.bf16.mxu0 0
    %522 = vmatpush2.bf16.msra.mxu0 0
    %523 = vmatprep.subr.bf16.mxu0 0
    %524 = vmatpush2.bf16.msra.mxu0 0
    %525 = vmatprep.subr.bf16.mxu0 0
    %526 = vmatpush2.bf16.msra.mxu0 0
    %527 = vmatprep.subr.bf16.mxu0 0
    %528 = vmatpush2.bf16.msra.mxu0 0
    %529 = vmatprep.mubr.bf16.mxu0 0
    %530 = vmatmul.mubr.bf16.gmra.mxu0 %v276
    %v531 = vpop.f32.mrf.mxu0
    %v532 = vadd.f32 %v322, %v531
    %v533 = vpop.f32.mrf.mxu0
    %v534 = vpop.f32.mrf.mxu0
    %v535 = vadd.f32 %v322, %v534
    %v536 = vpop.f32.mrf.mxu0
    %537 = vdwg.mxu0
    %v538 = vpack.c.bf16 %v275, %v274
    %v539 = vld [vmem:[#allocation10] sm:$0xff]
    %v540 = vld [vmem:[#allocation10 + $0x8] sm:$0xff]
    %v541 = vld [vmem:[#allocation10 + $0x10] sm:$0xff]
    %v542 = vld [vmem:[#allocation10 + $0x18] sm:$0xff]
    %v543 = vld [vmem:[#allocation10 + $0x20] sm:$0xff]
    %v544 = vld [vmem:[#allocation10 + $0x28] sm:$0xff]
    %v545 = vld [vmem:[#allocation10 + $0x30] sm:$0xff]
    %v546 = vld [vmem:[#allocation10 + $0x38] sm:$0xff]
    %v547 = vld [vmem:[#allocation10 + $0x40] sm:$0xff]
    %v548 = vld [vmem:[#allocation10 + $0x48] sm:$0xff]
    %v549 = vld [vmem:[#allocation10 + $0x50] sm:$0xff]
    %v550 = vld [vmem:[#allocation10 + $0x58] sm:$0xff]
    %v551 = vld [vmem:[#allocation10 + $0x60] sm:$0xff]
    %v552 = vld [vmem:[#allocation10 + $0x68] sm:$0xff]
    %v553 = vld [vmem:[#allocation10 + $0x70] sm:$0xff]
    %v554 = vld [vmem:[#allocation10 + $0x78] sm:$0xff]
    %v571 = vunpack.c.l.b16 %v539
    %v572 = vunpack.c.h.b16 %v539
    %v573 = vunpack.c.l.b16 %v540
    %v574 = vunpack.c.h.b16 %v540
    %v575 = vunpack.c.l.b16 %v541
    %v576 = vunpack.c.h.b16 %v541
    %v577 = vunpack.c.l.b16 %v542
    %v578 = vunpack.c.h.b16 %v542
    %v579 = vunpack.c.l.b16 %v543
    %v580 = vunpack.c.h.b16 %v543
    %v581 = vunpack.c.l.b16 %v544
    %v582 = vunpack.c.h.b16 %v544
    %v583 = vunpack.c.l.b16 %v545
    %v584 = vunpack.c.h.b16 %v545
    %v585 = vunpack.c.l.b16 %v546
    %v586 = vunpack.c.h.b16 %v546
    %v587 = vunpack.c.l.b16 %v547
    %v588 = vunpack.c.h.b16 %v547
    %v589 = vunpack.c.l.b16 %v548
    %v590 = vunpack.c.h.b16 %v548
    %v591 = vunpack.c.l.b16 %v549
    %v592 = vunpack.c.h.b16 %v549
    %v593 = vunpack.c.l.b16 %v550
    %v594 = vunpack.c.h.b16 %v550
    %v595 = vunpack.c.l.b16 %v551
    %v596 = vunpack.c.h.b16 %v551
    %v597 = vunpack.c.l.b16 %v552
    %v598 = vunpack.c.h.b16 %v552
    %v599 = vunpack.c.l.b16 %v553
    %v600 = vunpack.c.h.b16 %v553
    %v601 = vunpack.c.l.b16 %v554
    %v602 = vunpack.c.h.b16 %v554
    %v603 = vpack.c.b16 %v573, %v571
    %v604 = vpack.c.b16 %v574, %v572
    %v605 = vpack.c.b16 %v577, %v575
    %v606 = vpack.c.b16 %v578, %v576
    %v607 = vpack.c.b16 %v581, %v579
    %v608 = vpack.c.b16 %v582, %v580
    %v609 = vpack.c.b16 %v585, %v583
    %v610 = vpack.c.b16 %v586, %v584
    %v611 = vpack.c.b16 %v589, %v587
    %v612 = vpack.c.b16 %v590, %v588
    %v613 = vpack.c.b16 %v593, %v591
    %v614 = vpack.c.b16 %v594, %v592
    %v615 = vpack.c.b16 %v597, %v595
    %v616 = vpack.c.b16 %v598, %v596
    %v617 = vpack.c.b16 %v601, %v599
    %v618 = vpack.c.b16 %v602, %v600
    %635 = vmatprep.subr.bf16.mxu0 %v618
    %636 = vmatpush1.bf16.msra.mxu0 %v617
    %637 = vmatprep.subr.bf16.mxu0 %v616
    %638 = vmatpush1.bf16.msra.mxu0 %v615
    %639 = vmatprep.subr.bf16.mxu0 %v614
    %640 = vmatpush1.bf16.msra.mxu0 %v613
    %641 = vmatprep.subr.bf16.mxu0 %v612
    %642 = vmatpush1.bf16.msra.mxu0 %v611
    %643 = vmatprep.subr.bf16.mxu0 %v610
    %644 = vmatpush1.bf16.msra.mxu0 %v609
    %645 = vmatprep.subr.bf16.mxu0 %v608
    %646 = vmatpush1.bf16.msra.mxu0 %v607
    %647 = vmatprep.subr.bf16.mxu0 %v606
    %648 = vmatpush1.bf16.msra.mxu0 %v605
    %649 = vmatprep.subr.bf16.mxu0 %v604
    %650 = vmatpush1.bf16.msra.mxu0 %v603
    %651 = vmatprep.subr.bf16.mxu0 0
    %652 = vmatpush2.bf16.msra.mxu0 0
    %653 = vmatprep.subr.bf16.mxu0 0
    %654 = vmatpush2.bf16.msra.mxu0 0
    %655 = vmatprep.subr.bf16.mxu0 0
    %656 = vmatpush2.bf16.msra.mxu0 0
    %657 = vmatprep.subr.bf16.mxu0 0
    %658 = vmatpush2.bf16.msra.mxu0 0
    %659 = vmatprep.subr.bf16.mxu0 0
    %660 = vmatpush2.bf16.msra.mxu0 0
    %661 = vmatprep.subr.bf16.mxu0 0
    %662 = vmatpush2.bf16.msra.mxu0 0
    %663 = vmatprep.subr.bf16.mxu0 0
    %664 = vmatpush2.bf16.msra.mxu0 0
    %665 = vmatprep.subr.bf16.mxu0 0
    %666 = vmatpush2.bf16.msra.mxu0 0
    %667 = vmatprep.mubr.bf16.mxu0 0
    %668 = vmatmul.mubr.bf16.gmra.mxu0 %v538
    %v669 = vpop.f32.mrf.mxu0
    %v670 = vadd.f32 0.0, %v669
    %v671 = vpop.f32.mrf.mxu0
    %v672 = vadd.f32 0.0, %v671
    %v673 = vpop.f32.mrf.mxu0
    %v674 = vadd.f32 0.0, %v673
    %v675 = vpop.f32.mrf.mxu0
    %v676 = vadd.f32 0.0, %v675
    %677 = vdwg.mxu0
    %v678 = vadd.f32 %v489, %v670
    %v679 = vadd.f32 %v493, %v674
    %v680 = vadd.f32 %v491, %v672
    %v681 = vadd.f32 %v495, %v676
    %v682 = vmul.f32 %v678, 0.5
    %v683 = vmul.f32 %v679, 0.5
    %v684 = vtanh.pop %v682
    %v685 = vtanh.pop %v683
    %v686 = vadd.f32 %v684, 1.0
    %v687 = vadd.f32 %v685, 1.0
    %v688 = vmul.f32 %v686, 0.5
    %v689 = vmul.f32 %v687, 0.5
    %v690 = vmul.f32 %v680, 0.5
    %v691 = vmul.f32 %v681, 0.5
    %v692 = vtanh.pop %v690
    %v693 = vtanh.pop %v691
    %v694 = vadd.f32 %v692, 1.0
    %v695 = vadd.f32 %v693, 1.0
    %v696 = vmul.f32 %v694, 0.5
    %v697 = vmul.f32 %v695, 0.5
    %v698 = vmul.f32 %v688, %v274
    %v699 = vmul.f32 %v689, %v275
    %v700 = vpack.c.bf16 %v699, %v698
    %v701 = vld [vmem:[#allocation11] sm:$0xf]
    %v702 = vld [vmem:[#allocation11 + $0x4] sm:$0xf]
    %v703 = vld [vmem:[#allocation11 + $0x8] sm:$0xf]
    %v704 = vld [vmem:[#allocation11 + $0xc] sm:$0xf]
    %v705 = vld [vmem:[#allocation11 + $0x10] sm:$0xf]
    %v706 = vld [vmem:[#allocation11 + $0x14] sm:$0xf]
    %v707 = vld [vmem:[#allocation11 + $0x18] sm:$0xf]
    %v708 = vld [vmem:[#allocation11 + $0x1c] sm:$0xf]
    %v709 = vld [vmem:[#allocation11 + $0x20] sm:$0xf]
    %v710 = vld [vmem:[#allocation11 + $0x24] sm:$0xf]
    %v711 = vld [vmem:[#allocation11 + $0x28] sm:$0xf]
    %v712 = vld [vmem:[#allocation11 + $0x2c] sm:$0xf]
    %v713 = vld [vmem:[#allocation11 + $0x30] sm:$0xf]
    %v714 = vld [vmem:[#allocation11 + $0x34] sm:$0xf]
    %v715 = vld [vmem:[#allocation11 + $0x38] sm:$0xf]
    %v716 = vld [vmem:[#allocation11 + $0x3c] sm:$0xf]
    %v733 = vunpack.c.l.b16 %v701
    %v734 = vunpack.c.l.b16 %v702
    %v735 = vunpack.c.l.b16 %v703
    %v736 = vunpack.c.l.b16 %v704
    %v737 = vunpack.c.l.b16 %v705
    %v738 = vunpack.c.l.b16 %v706
    %v739 = vunpack.c.l.b16 %v707
    %v740 = vunpack.c.l.b16 %v708
    %v741 = vunpack.c.l.b16 %v709
    %v742 = vunpack.c.l.b16 %v710
    %v743 = vunpack.c.l.b16 %v711
    %v744 = vunpack.c.l.b16 %v712
    %v745 = vunpack.c.l.b16 %v713
    %v746 = vunpack.c.l.b16 %v714
    %v747 = vunpack.c.l.b16 %v715
    %v748 = vunpack.c.l.b16 %v716
    %v749 = vpack.c.b16 %v734, %v733
    %v750 = vpack.c.b16 %v736, %v735
    %v751 = vpack.c.b16 %v738, %v737
    %v752 = vpack.c.b16 %v740, %v739
    %v753 = vpack.c.b16 %v742, %v741
    %v754 = vpack.c.b16 %v744, %v743
    %v755 = vpack.c.b16 %v746, %v745
    %v756 = vpack.c.b16 %v748, %v747
    %765 = vmatprep.subr.bf16.mxu0 0
    %766 = vmatpush1.bf16.msra.mxu0 %v756
    %767 = vmatprep.subr.bf16.mxu0 0
    %768 = vmatpush1.bf16.msra.mxu0 %v755
    %769 = vmatprep.subr.bf16.mxu0 0
    %770 = vmatpush1.bf16.msra.mxu0 %v754
    %771 = vmatprep.subr.bf16.mxu0 0
    %772 = vmatpush1.bf16.msra.mxu0 %v753
    %773 = vmatprep.subr.bf16.mxu0 0
    %774 = vmatpush1.bf16.msra.mxu0 %v752
    %775 = vmatprep.subr.bf16.mxu0 0
    %776 = vmatpush1.bf16.msra.mxu0 %v751
    %777 = vmatprep.subr.bf16.mxu0 0
    %778 = vmatpush1.bf16.msra.mxu0 %v750
    %779 = vmatprep.subr.bf16.mxu0 0
    %780 = vmatpush1.bf16.msra.mxu0 %v749
    %781 = vmatprep.subr.bf16.mxu0 0
    %782 = vmatpush2.bf16.msra.mxu0 0
    %783 = vmatprep.subr.bf16.mxu0 0
    %784 = vmatpush2.bf16.msra.mxu0 0
    %785 = vmatprep.subr.bf16.mxu0 0
    %786 = vmatpush2.bf16.msra.mxu0 0
    %787 = vmatprep.subr.bf16.mxu0 0
    %788 = vmatpush2.bf16.msra.mxu0 0
    %789 = vmatprep.subr.bf16.mxu0 0
    %790 = vmatpush2.bf16.msra.mxu0 0
    %791 = vmatprep.subr.bf16.mxu0 0
    %792 = vmatpush2.bf16.msra.mxu0 0
    %793 = vmatprep.subr.bf16.mxu0 0
    %794 = vmatpush2.bf16.msra.mxu0 0
    %795 = vmatprep.subr.bf16.mxu0 0
    %796 = vmatpush2.bf16.msra.mxu0 0
    %797 = vmatprep.mubr.bf16.mxu0 0
    %798 = vmatmul.mubr.bf16.gmra.mxu0 %v700
    %v799 = vpop.f32.mrf.mxu0
    %v800 = vadd.f32 0.0, %v799
    %v801 = vpop.f32.mrf.mxu0
    %v802 = vpop.f32.mrf.mxu0
    %v803 = vadd.f32 0.0, %v802
    %v804 = vpop.f32.mrf.mxu0
    %805 = vdwg.mxu0
    %v806 = vadd.f32 %v532, %v800
    %v807 = vadd.f32 %v535, %v803
    %v808 = vtanh.pop %v806
    %v809 = vtanh.pop %v807
    %v810 = vsub.f32 %v808, %v274
    %v811 = vsub.f32 %v809, %v275
    %v812 = vmul.f32 %v696, %v810
    %v813 = vmul.f32 %v697, %v811
    %v814 = vadd.f32 %v274, %v812
    %v815 = vadd.f32 %v275, %v813
    %816 = vst [vmem:[#allocation13] sm:$0xff] %v814
    %817 = vst [vmem:[#allocation13 + $0x8] sm:$0xff] %v815
    // Predicated region
    $region54: #{tpu_custom_call.1} parent=1 // pred_check
      _
    $region55: #{tpu_custom_call.1} parent=1 // pred_check_branch
      %819 = sbr.rel (0) target = $region57
    $region56: #{tpu_custom_call.1} parent=1 // pred_region
      %s821 = ssub.s32 256, 256
      %822 = vsyncadd [#allocation4], %s821
      %s823 = sshll.u32 [#allocation13], 4
      %s824 = int_to_ptr.vmem [resolvable:$true] %s823
      %829 = dma.vmem_to_hbm [thread:$0]  %s824, 256, %s7, [#allocation4], 128, 128, 8
    $region57: #{tpu_custom_call.1} parent=1 // pred_fallthru
      _
    // Predicated region
    $region58: #{tpu_custom_call.1} parent=1 // pred_check
      _
    $region59: #{tpu_custom_call.1} parent=1 // pred_check_branch
      %831 = sbr.rel (0) target = $region61
    $region60: #{tpu_custom_call.1} parent=1 // pred_region
      %832 = dma.done [#allocation4], 256
    $region61: #{tpu_custom_call.1} parent=1 // pred_fallthru
      _
    %833 = vsyncpa [#allocation3], 1
    %834 = vsyncpa [#allocation6], 1
    %835 = vsyncpa [#allocation9], 1
    %836 = vsyncpa [#allocation12], 1
    %837 = vsyncpa [#allocation4], 1

</llo_original>
